<compile_context>
chip_gen: v6e
topology: v6e:2x2x1
jax: 0.10.0
libtpu: 0.0.40
codegen_flags: <defaults>
</compile_context>

<pallas_src>
import math

import jax
import jax.numpy as jnp
from jax.experimental import pallas as pl
from jax.experimental.pallas import tpu as pltpu

_LOG_2PI = math.log(2.0 * math.pi)


# -----------------------------------------------------------------------------
# Kernel
# -----------------------------------------------------------------------------
def _make_kernel(BT, P, H, fused):
    """Kernel for one batch tile: BT batches, all P particles of each batch."""

    def kernel(enc_ref, part_ref, w1_ref, b1_ref, w2_ref, b2_ref, *rest):
        out_ref = rest[-1]
        cdt = w1_ref.dtype                      # MXU input dtype (bf16 or f32)

        x = part_ref[...]                                              # (M, S)

        # particle encoder MLP: Linear -> ReLU -> Linear (f32 accumulation)
        h = jnp.dot(x, w1_ref[...], preferred_element_type=jnp.float32) + b1_ref[...]
        h = jnp.maximum(h, 0.0).astype(cdt)                            # (M, H)
        e = (jnp.dot(h, w2_ref[...], preferred_element_type=jnp.float32)
             + b2_ref[...]).astype(cdt)                                # (M, H)

        obs = enc_ref[...][:, None, :]                                 # (BT, 1, H)

        if fused:
            # ws|wt|log_det fused into one (H, 2H+128) matmul.  The trailing
            # 128-lane tile carries log_det = e @ ws.sum(axis=1) + bs.sum()
            # in its first column; the other 127 pad columns are zero, so a
            # lane reduce over that tile recovers it (reduce width capped at
            # 128 regardless of H, and the :H / H:2H slices are lane-tile
            # aligned views).
            wst_ref, bst_ref = rest[0], rest[1]
            st = (jnp.dot(e, wst_ref[...], preferred_element_type=jnp.float32)
                  + bst_ref[...])                                      # (M, 2H+128)
            s3 = st[:, :H].reshape(BT, P, H)
            z = obs * jnp.exp(s3) + st[:, H:2 * H].reshape(BT, P, H)
            log_det = jnp.sum(st[:, 2 * H:].reshape(BT, P, 128), axis=-1)
        else:
            # H not a multiple of 128: splitting a fused output would cut
            # inside a lane tile, so keep two separate (H, H) matmuls.
            ws_ref, bs_ref, wt_ref, bt_ref = rest[0], rest[1], rest[2], rest[3]
            s = jnp.dot(e, ws_ref[...], preferred_element_type=jnp.float32) + bs_ref[...]
            t = jnp.dot(e, wt_ref[...], preferred_element_type=jnp.float32) + bt_ref[...]
            s3 = s.reshape(BT, P, H)
            z = obs * jnp.exp(s3) + t.reshape(BT, P, H)
            log_det = jnp.sum(s3, axis=-1)                             # (BT, P)

        log_prob_z = -0.5 * jnp.sum(z * z, axis=-1) - 0.5 * H * _LOG_2PI
        lik = log_prob_z + log_det                                     # (BT, P)
        # per-batch max over particles: in-tile lane reduce; lane-dense store.
        out_ref[...] = lik - jnp.max(lik, axis=-1, keepdims=True)

    return kernel


# -----------------------------------------------------------------------------
# Sizing helpers
# -----------------------------------------------------------------------------
def _vmem_limit_bytes():
    """7/8 of physical VMEM (128 MiB v5e/v6e, 64 MiB v7x); conservative fallback."""
    try:
        cap = int(pltpu.get_tpu_info().vmem_capacity_bytes)
    except Exception:
        cap = 64 * 1024 * 1024
    return (cap * 7) // 8


def _choose_batch_tile(batch, n_particles, state_dim, hidden_dim, n_out,
                       in_itemsize, vmem_budget_bytes, weight_bytes):
    """Pick BT such that:
      * BT divides batch and (BT == batch or BT % 8 == 0) -> sublane-friendly,
      * all P particles of a batch stay inside one tile (in-tile per-batch max),
      * the working set fits the per-generation VMEM budget,
      * grid >= 2 is preferred so v7x can shard steps over its 2 TensorCores
        (costs only one extra ~0.35us grid step on single-TC v5e/v6e)."""
    cands = [d for d in range(1, batch + 1)
             if batch % d == 0 and (d == batch or d % 8 == 0)]
    per_row = (2 * state_dim * in_itemsize               # double-buffered particle tile
               + 4 * (5 * hidden_dim + n_out))           # live f32 intermediates
    per_batch = 2 * 4 * (hidden_dim + n_particles)       # enc + out tiles (x2 buffers)
    avail = max(vmem_budget_bytes - weight_bytes, 0)
    fitting = [d for d in cands
               if d * (n_particles * per_row + per_batch) <= avail]
    if not fitting:
        # Nothing fits the budget: smallest legal tile (compile-time OOM risk
        # at extreme H*P, never a correctness risk).
        return min(cands)
    multi = [d for d in fitting if d <= batch // 2]
    return max(multi) if multi else max(fitting)


def _prepare_operands(encodings, update_particles, params, matmul_dtype, fused):
    """Trace-time weight fusion / dtype casts shared by kernel and reference."""
    B, H = encodings.shape
    _, P, S = update_particles.shape
    md = matmul_dtype
    ops = {
        "enc": encodings.astype(jnp.float32),
        "x": update_particles.astype(jnp.float32).reshape(B * P, S).astype(md),
        "w1": params["w1"].astype(md), "b1": params["b1"].astype(jnp.float32),
        "w2": params["w2"].astype(md), "b2": params["b2"].astype(jnp.float32),
    }
    if fused:
        ld_w = jnp.sum(params["ws"], axis=1, keepdims=True)           # (H, 1)
        ld_b = jnp.sum(params["bs"], axis=1, keepdims=True)           # (1, 1)
        ops["wst"] = jnp.concatenate(
            [params["ws"], params["wt"], ld_w, jnp.zeros((H, 127), jnp.float32)],
            axis=1).astype(md)                                         # (H, 2H+128)
        ops["bst"] = jnp.concatenate(
            [params["bs"], params["bt"], ld_b, jnp.zeros((1, 127), jnp.float32)],
            axis=1).astype(jnp.float32)                                # (1, 2H+128)
    else:
        ops["ws"] = params["ws"].astype(md); ops["bs"] = params["bs"].astype(jnp.float32)
        ops["wt"] = params["wt"].astype(md); ops["bt"] = params["bt"].astype(jnp.float32)
    return ops


# -----------------------------------------------------------------------------
# Wrapper
# -----------------------------------------------------------------------------
def measurement_model_cnf_forward(encodings, update_particles, params, *,
                                  batch_tile=None, matmul_dtype=jnp.bfloat16):
    """encodings: [B, H] f32, update_particles: [B, P, S] f32 -> [B, P] f32."""
    B, H = encodings.shape
    _, P, S = update_particles.shape

    fused = (H % 128 == 0)                 # fuse only when the split is lane-aligned
    n_out = 2 * H + 128 if fused else 2 * H

    ops = _prepare_operands(encodings, update_particles, params, matmul_dtype, fused)
    in_itemsize = jnp.dtype(matmul_dtype).itemsize

    vmem_limit = _vmem_limit_bytes()
    weight_elems = S * H + H * H + (H * n_out if fused else 2 * H * H)
    bias_bytes = 4 * (2 * H + n_out)
    weight_bytes = in_itemsize * weight_elems + bias_bytes

    if batch_tile is None:
        BT = _choose_batch_tile(B, P, S, H, n_out, in_itemsize,
                                int(0.7 * vmem_limit), weight_bytes)
    else:
        BT = batch_tile
    assert B % BT == 0
    M = BT * P

    kernel = _make_kernel(BT, P, H, fused)
    weight_keys = (["w1", "b1", "w2", "b2"]
                   + (["wst", "bst"] if fused else ["ws", "bs", "wt", "bt"]))
    args = [ops["enc"], ops["x"]] + [ops[k] for k in weight_keys]

    cost = pl.CostEstimate(
        flops=2 * B * P * H * (S + H + n_out) + 10 * B * P * H,
        transcendentals=B * P * H,                                 # exp(s)
        bytes_accessed=(in_itemsize * (B * P * S + weight_elems)
                        + 4 * (B * H + B * P) + bias_bytes),
    )

    def run(single_buffer_weights):
        def weight_spec(shape):
            idx = lambda b: (0,) * len(shape)
            if single_buffer_weights:
                # grid-invariant: DMA'd once; a single buffer halves weight VMEM.
                return pl.BlockSpec(shape, idx, pipeline_mode=pl.Buffered(1))
            return pl.BlockSpec(shape, idx)

        in_specs = ([pl.BlockSpec((BT, H), lambda b: (b, 0)),      # encodings
                     pl.BlockSpec((M, S), lambda b: (b, 0))]       # particles (flattened)
                    + [weight_spec(ops[k].shape) for k in weight_keys])

        return pl.pallas_call(
            kernel,
            out_shape=jax.ShapeDtypeStruct((B, P), jnp.float32),
            grid=(B // BT,),
            in_specs=in_specs,
            # TODO(synk): P < 128 produces masked partial stores; output bytes
            # are tiny (B*P*4) so padding P to 128 is not worth the gather.
            out_specs=pl.BlockSpec((BT, P), lambda b: (b, 0)),
            compiler_params=pltpu.CompilerParams(
                dimension_semantics=("parallel",),
                vmem_limit_bytes=int(vmem_limit)),
            cost_estimate=cost,
        )(*args)

    try:
        return run(True)
    except Exception:
        # pipeline_mode / pl.Buffered unavailable in this jax build: fall back
        # to default double-buffered weights (numerically identical).
        return run(False)


# -----------------------------------------------------------------------------
# References (pure JAX) for verification
# -----------------------------------------------------------------------------
def _hp_dot(a, b):
    return jnp.dot(a, b, precision=jax.lax.Precision.HIGHEST)


def _reference_f32(encodings, update_particles, params):
    """Pure-f32 mirror of the PyTorch forward (semantic ground truth)."""
    B, P, S = update_particles.shape
    H = encodings.shape[-1]
    x = update_particles.reshape(-1, S).astype(jnp.float32)
    h = jnp.maximum(_hp_dot(x, params["w1"]) + params["b1"], 0.0)
    e = _hp_dot(h, params["w2"]) + params["b2"]
    obs = jnp.repeat(encodings.astype(jnp.float32)[:, None, :], P, axis=1).reshape(-1, H)
    s = _hp_dot(e, params["ws"]) + params["bs"]
    t = _hp_dot(e, params["wt"]) + params["bt"]
    z = obs * jnp.exp(s) + t
    log_det = jnp.sum(s, axis=-1)
    log_prob_z = -0.5 * jnp.sum(z * z, axis=-1) - 0.5 * H * _LOG_2PI
    lik = (log_prob_z + log_det).reshape(B, P)
    return lik - jnp.max(lik, axis=-1, keepdims=True)


def _reference_mirror(encodings, update_particles, params, matmul_dtype, fused):
    """Mirror of the kernel's exact math (same casts / fused weights / log_det)."""
    B, P, S = update_particles.shape
    H = encodings.shape[-1]
    md = matmul_dtype
    ops = _prepare_operands(encodings, update_particles, params, md, fused)
    up = lambda a: a.astype(jnp.float32)
    x = up(ops["x"])
    h = jnp.maximum(_hp_dot(x, up(ops["w1"])) + ops["b1"], 0.0)
    h = up(h.astype(md))
    e = _hp_dot(h, up(ops["w2"])) + ops["b2"]
    e = up(e.astype(md))
    obs = jnp.repeat(up(ops["enc"])[:, None, :], P, axis=1).reshape(-1, H)
    if fused:
        st = _hp_dot(e, up(ops["wst"])) + ops["bst"]
        s, t = st[:, :H], st[:, H:2 * H]
        log_det = jnp.sum(st[:, 2 * H:], axis=-1)
    else:
        s = _hp_dot(e, up(ops["ws"])) + ops["bs"]
        t = _hp_dot(e, up(ops["wt"])) + ops["bt"]
        log_det = jnp.sum(s, axis=-1)
    z = obs * jnp.exp(s) + t
    log_prob_z = -0.5 * jnp.sum(z * z, axis=-1) - 0.5 * H * _LOG_2PI
    lik = (log_prob_z + log_det).reshape(B, P)
    return lik - jnp.max(lik, axis=-1, keepdims=True)


def _init_params(key, state_dim, hidden_dim):
    ks = jax.random.split(key, 8)
    scale = 0.1
    shp = [(state_dim, hidden_dim), (1, hidden_dim), (hidden_dim, hidden_dim),
           (1, hidden_dim), (hidden_dim, hidden_dim), (1, hidden_dim),
           (hidden_dim, hidden_dim), (1, hidden_dim)]
    names = ["w1", "b1", "w2", "b2", "ws", "bs", "wt", "bt"]
    return {n: scale * jax.random.normal(k, s, jnp.float32)
            for n, k, s in zip(names, ks, shp)}


if __name__ == "__main__":
    B, P, S = 2, 8, 4
    base_key = jax.random.PRNGKey(0)

    def check(H, matmul_dtype, atol_mirror, rtol_mirror, gross_bound):
        k_enc, k_part, k_params = jax.random.split(jax.random.fold_in(base_key, H), 3)
        encodings = jax.random.normal(k_enc, (B, H), jnp.float32)
        update_particles = jax.random.normal(k_part, (B, P, S), jnp.float32)
        params = _init_params(k_params, S, H)

        out = measurement_model_cnf_forward(encodings, update_particles, params,
                                            matmul_dtype=matmul_dtype)
        out = jax.block_until_ready(out)
        assert out.shape == (B, P)

        fused = (H % 128 == 0)
        mirror = _reference_mirror(encodings, update_particles, params,
                                   matmul_dtype, fused)
        ref32 = _reference_f32(encodings, update_particles, params)
        err_mirror = float(jnp.max(jnp.abs(out - mirror)))
        err_f32 = float(jnp.max(jnp.abs(out - ref32)))
        # tight check vs a reference mirroring the kernel's exact casts/fusion
        assert jnp.allclose(out, mirror, atol=atol_mirror, rtol=rtol_mirror), (
            H, str(matmul_dtype), err_mirror)
        # coarse semantic check vs the pure-f32 reference (bounds bf16 error)
        assert err_f32 < gross_bound, (H, str(matmul_dtype), err_f32)

    # exact f32 path, split CNF heads (H not a multiple of 128)
    check(32, jnp.float32, atol_mirror=5e-3, rtol_mirror=1e-3, gross_bound=5e-3)
    # bf16 MXU path, split heads
    check(32, jnp.bfloat16, atol_mirror=0.15, rtol_mirror=0.05, gross_bound=2.0)
    # bf16 MXU path, fused ws|wt + folded log_det column (H % 128 == 0)
    check(128, jnp.bfloat16, atol_mirror=0.15, rtol_mirror=0.05, gross_bound=2.0)

    # TODO(synk): the real particle_encoder / CNF architectures are external
    # modules not defined in model/models.py; synthetic equivalents are used.
    print("KERNEL_OK")
</pallas_src>

<mosaic_0001>
module attributes {stable_mosaic.version = 11 : i64} {
  func.func @kernel(%arg0: i32, %arg1: memref<2x32xf32, #tpu.memory_space<vmem>>, %arg2: memref<16x4xf32, #tpu.memory_space<vmem>>, %arg3: memref<4x32xf32, #tpu.memory_space<vmem>>, %arg4: memref<1x32xf32, #tpu.memory_space<vmem>>, %arg5: memref<32x32xf32, #tpu.memory_space<vmem>>, %arg6: memref<1x32xf32, #tpu.memory_space<vmem>>, %arg7: memref<32x32xf32, #tpu.memory_space<vmem>>, %arg8: memref<1x32xf32, #tpu.memory_space<vmem>>, %arg9: memref<32x32xf32, #tpu.memory_space<vmem>>, %arg10: memref<1x32xf32, #tpu.memory_space<vmem>>, %arg11: memref<2x8xf32, #tpu.memory_space<vmem>>) attributes {dimension_semantics = [#tpu.dimension_semantics<parallel>], iteration_bounds = array<i64: 1>, scalar_prefetch = 0 : i64, scratch_operands = 0 : i64, tpu.core_type = #tpu.core_type<tc>, window_params = [{transform_indices = @transform_0, window_bounds = array<i64: 2, 32>}, {transform_indices = @transform_1, window_bounds = array<i64: 16, 4>}, {pipeline_mode = #tpu.pipeline_mode<synchronous>, transform_indices = @transform_2, window_bounds = array<i64: 4, 32>}, {pipeline_mode = #tpu.pipeline_mode<synchronous>, transform_indices = @transform_3, window_bounds = array<i64: 1, 32>}, {pipeline_mode = #tpu.pipeline_mode<synchronous>, transform_indices = @transform_4, window_bounds = array<i64: 32, 32>}, {pipeline_mode = #tpu.pipeline_mode<synchronous>, transform_indices = @transform_5, window_bounds = array<i64: 1, 32>}, {pipeline_mode = #tpu.pipeline_mode<synchronous>, transform_indices = @transform_6, window_bounds = array<i64: 32, 32>}, {pipeline_mode = #tpu.pipeline_mode<synchronous>, transform_indices = @transform_7, window_bounds = array<i64: 1, 32>}, {pipeline_mode = #tpu.pipeline_mode<synchronous>, transform_indices = @transform_8, window_bounds = array<i64: 32, 32>}, {pipeline_mode = #tpu.pipeline_mode<synchronous>, transform_indices = @transform_9, window_bounds = array<i64: 1, 32>}, {transform_indices = @transform_10, window_bounds = array<i64: 2, 8>}]} {
    %c0 = arith.constant 0 : index
    %c0_0 = arith.constant 0 : index
    %0 = vector.load %arg2[%c0, %c0_0] : memref<16x4xf32, #tpu.memory_space<vmem>>, vector<16x4xf32>
    %c0_1 = arith.constant 0 : index
    %c0_2 = arith.constant 0 : index
    %1 = vector.load %arg3[%c0_1, %c0_2] : memref<4x32xf32, #tpu.memory_space<vmem>>, vector<4x32xf32>
    %cst = arith.constant dense<0.000000e+00> : vector<16x32xf32>
    %2 = tpu.matmul %0, %1, %cst {dimension_numbers = #tpu.dot_dimension_numbers<[1], [0], [0], [1], [0, 0, 1, 1], [], []>} : vector<16x4xf32>, vector<4x32xf32>, vector<16x32xf32> -> vector<16x32xf32>
    %c0_3 = arith.constant 0 : index
    %c0_4 = arith.constant 0 : index
    %3 = vector.load %arg4[%c0_3, %c0_4] : memref<1x32xf32, #tpu.memory_space<vmem>>, vector<1x32xf32>
    %4 = vector.broadcast %3 : vector<1x32xf32> to vector<16x32xf32>
    %5 = arith.addf %2, %4 : vector<16x32xf32>
    %cst_5 = arith.constant 0.000000e+00 : f32
    %6 = vector.broadcast %cst_5 : f32 to vector<16x32xf32>
    %7 = arith.maximumf %5, %6 : vector<16x32xf32>
    %c0_6 = arith.constant 0 : index
    %c0_7 = arith.constant 0 : index
    %8 = vector.load %arg5[%c0_6, %c0_7] : memref<32x32xf32, #tpu.memory_space<vmem>>, vector<32x32xf32>
    %cst_8 = arith.constant dense<0.000000e+00> : vector<16x32xf32>
    %9 = tpu.matmul %7, %8, %cst_8 {dimension_numbers = #tpu.dot_dimension_numbers<[1], [0], [0], [1], [0, 0, 1, 1], [], []>} : vector<16x32xf32>, vector<32x32xf32>, vector<16x32xf32> -> vector<16x32xf32>
    %c0_9 = arith.constant 0 : index
    %c0_10 = arith.constant 0 : index
    %10 = vector.load %arg6[%c0_9, %c0_10] : memref<1x32xf32, #tpu.memory_space<vmem>>, vector<1x32xf32>
    %11 = vector.broadcast %10 : vector<1x32xf32> to vector<16x32xf32>
    %12 = arith.addf %9, %11 : vector<16x32xf32>
    %c0_11 = arith.constant 0 : index
    %c0_12 = arith.constant 0 : index
    %13 = vector.load %arg1[%c0_11, %c0_12] : memref<2x32xf32, #tpu.memory_space<vmem>>, vector<2x32xf32>
    %14 = vector.shape_cast %13 : vector<2x32xf32> to vector<2x1x32xf32>
    %c0_13 = arith.constant 0 : index
    %c0_14 = arith.constant 0 : index
    %15 = vector.load %arg7[%c0_13, %c0_14] : memref<32x32xf32, #tpu.memory_space<vmem>>, vector<32x32xf32>
    %cst_15 = arith.constant dense<0.000000e+00> : vector<16x32xf32>
    %16 = tpu.matmul %12, %15, %cst_15 {dimension_numbers = #tpu.dot_dimension_numbers<[1], [0], [0], [1], [0, 0, 1, 1], [], []>} : vector<16x32xf32>, vector<32x32xf32>, vector<16x32xf32> -> vector<16x32xf32>
    %c0_16 = arith.constant 0 : index
    %c0_17 = arith.constant 0 : index
    %17 = vector.load %arg8[%c0_16, %c0_17] : memref<1x32xf32, #tpu.memory_space<vmem>>, vector<1x32xf32>
    %18 = vector.broadcast %17 : vector<1x32xf32> to vector<16x32xf32>
    %19 = arith.addf %16, %18 : vector<16x32xf32>
    %c0_18 = arith.constant 0 : index
    %c0_19 = arith.constant 0 : index
    %20 = vector.load %arg9[%c0_18, %c0_19] : memref<32x32xf32, #tpu.memory_space<vmem>>, vector<32x32xf32>
    %cst_20 = arith.constant dense<0.000000e+00> : vector<16x32xf32>
    %21 = tpu.matmul %12, %20, %cst_20 {dimension_numbers = #tpu.dot_dimension_numbers<[1], [0], [0], [1], [0, 0, 1, 1], [], []>} : vector<16x32xf32>, vector<32x32xf32>, vector<16x32xf32> -> vector<16x32xf32>
    %c0_21 = arith.constant 0 : index
    %c0_22 = arith.constant 0 : index
    %22 = vector.load %arg10[%c0_21, %c0_22] : memref<1x32xf32, #tpu.memory_space<vmem>>, vector<1x32xf32>
    %23 = vector.broadcast %22 : vector<1x32xf32> to vector<16x32xf32>
    %24 = arith.addf %21, %23 : vector<16x32xf32>
    %25 = vector.shape_cast %19 : vector<16x32xf32> to vector<2x8x32xf32>
    %26 = math.exp %25 : vector<2x8x32xf32>
    %27 = vector.broadcast %14 : vector<2x1x32xf32> to vector<2x8x32xf32>
    %28 = arith.mulf %27, %26 : vector<2x8x32xf32>
    %29 = vector.shape_cast %24 : vector<16x32xf32> to vector<2x8x32xf32>
    %30 = arith.addf %28, %29 : vector<2x8x32xf32>
    %cst_23 = arith.constant dense<0.000000e+00> : vector<2x8xf32>
    %31 = vector.multi_reduction <add>, %25, %cst_23 [2] : vector<2x8x32xf32> to vector<2x8xf32>
    %32 = arith.mulf %30, %30 : vector<2x8x32xf32>
    %cst_24 = arith.constant dense<0.000000e+00> : vector<2x8xf32>
    %33 = vector.multi_reduction <add>, %32, %cst_24 [2] : vector<2x8x32xf32> to vector<2x8xf32>
    %cst_25 = arith.constant -5.000000e-01 : f32
    %34 = vector.broadcast %cst_25 : f32 to vector<2x8xf32>
    %35 = arith.mulf %34, %33 : vector<2x8xf32>
    %cst_26 = arith.constant 29.4060326 : f32
    %36 = vector.broadcast %cst_26 : f32 to vector<2x8xf32>
    %37 = arith.subf %35, %36 : vector<2x8xf32>
    %38 = arith.addf %37, %31 : vector<2x8xf32>
    %cst_27 = arith.constant dense<0xFF800000> : vector<2xf32>
    %39 = vector.multi_reduction <maximumf>, %38, %cst_27 [1] : vector<2x8xf32> to vector<2xf32>
    %40 = vector.shape_cast %39 : vector<2xf32> to vector<2x1xf32>
    %41 = vector.broadcast %40 : vector<2x1xf32> to vector<2x8xf32>
    %42 = arith.subf %38, %41 : vector<2x8xf32>
    %c0_28 = arith.constant 0 : index
    %c0_29 = arith.constant 0 : index
    %43 = vector.load %arg11[%c0_28, %c0_29] : memref<2x8xf32, #tpu.memory_space<vmem>>, vector<2x8xf32>
    tpu.vector_store %arg11[%c0_28, %c0_29], %42 {strides = array<i32>} : memref<2x8xf32, #tpu.memory_space<vmem>>, vector<2x8xf32>,
    return
  }
  func.func @transform_0(%arg0: i32) -> (i32, i32) {
    %c0_i32 = arith.constant 0 : i32
    %c0_i32_0 = arith.constant 0 : i32
    return %arg0, %c0_i32 : i32, i32
  }
  func.func @transform_1(%arg0: i32) -> (i32, i32) {
    %c0_i32 = arith.constant 0 : i32
    %c0_i32_0 = arith.constant 0 : i32
    return %arg0, %c0_i32 : i32, i32
  }
  func.func @transform_2(%arg0: i32) -> (i32, i32) {
    %c0_i32 = arith.constant 0 : i32
    %c0_i32_0 = arith.constant 0 : i32
    %c0_i32_1 = arith.constant 0 : i32
    return %c0_i32, %c0_i32_0 : i32, i32
  }
  func.func @transform_3(%arg0: i32) -> (i32, i32) {
    %c0_i32 = arith.constant 0 : i32
    %c0_i32_0 = arith.constant 0 : i32
    %c0_i32_1 = arith.constant 0 : i32
    return %c0_i32, %c0_i32_0 : i32, i32
  }
  func.func @transform_4(%arg0: i32) -> (i32, i32) {
    %c0_i32 = arith.constant 0 : i32
    %c0_i32_0 = arith.constant 0 : i32
    %c0_i32_1 = arith.constant 0 : i32
    return %c0_i32, %c0_i32_0 : i32, i32
  }
  func.func @transform_5(%arg0: i32) -> (i32, i32) {
    %c0_i32 = arith.constant 0 : i32
    %c0_i32_0 = arith.constant 0 : i32
    %c0_i32_1 = arith.constant 0 : i32
    return %c0_i32, %c0_i32_0 : i32, i32
  }
  func.func @transform_6(%arg0: i32) -> (i32, i32) {
    %c0_i32 = arith.constant 0 : i32
    %c0_i32_0 = arith.constant 0 : i32
    %c0_i32_1 = arith.constant 0 : i32
    return %c0_i32, %c0_i32_0 : i32, i32
  }
  func.func @transform_7(%arg0: i32) -> (i32, i32) {
    %c0_i32 = arith.constant 0 : i32
    %c0_i32_0 = arith.constant 0 : i32
    %c0_i32_1 = arith.constant 0 : i32
    return %c0_i32, %c0_i32_0 : i32, i32
  }
  func.func @transform_8(%arg0: i32) -> (i32, i32) {
    %c0_i32 = arith.constant 0 : i32
    %c0_i32_0 = arith.constant 0 : i32
    %c0_i32_1 = arith.constant 0 : i32
    return %c0_i32, %c0_i32_0 : i32, i32
  }
  func.func @transform_9(%arg0: i32) -> (i32, i32) {
    %c0_i32 = arith.constant 0 : i32
    %c0_i32_0 = arith.constant 0 : i32
    %c0_i32_1 = arith.constant 0 : i32
    return %c0_i32, %c0_i32_0 : i32, i32
  }
  func.func @transform_10(%arg0: i32) -> (i32, i32) {
    %c0_i32 = arith.constant 0 : i32
    %c0_i32_0 = arith.constant 0 : i32
    return %arg0, %c0_i32 : i32, i32
  }
}

module attributes {stable_mosaic.version = 11 : i64} {
  func.func @kernel(%arg0: i32, %arg1: memref<2x32xf32, #tpu.memory_space<vmem>>, %arg2: memref<16x4xf32, #tpu.memory_space<vmem>>, %arg3: memref<4x32xf32, #tpu.memory_space<vmem>>, %arg4: memref<1x32xf32, #tpu.memory_space<vmem>>, %arg5: memref<32x32xf32, #tpu.memory_space<vmem>>, %arg6: memref<1x32xf32, #tpu.memory_space<vmem>>, %arg7: memref<32x32xf32, #tpu.memory_space<vmem>>, %arg8: memref<1x32xf32, #tpu.memory_space<vmem>>, %arg9: memref<32x32xf32, #tpu.memory_space<vmem>>, %arg10: memref<1x32xf32, #tpu.memory_space<vmem>>, %arg11: memref<2x8xf32, #tpu.memory_space<vmem>>) attributes {dimension_semantics = [#tpu.dimension_semantics<parallel>], iteration_bounds = array<i64: 1>, scalar_prefetch = 0 : i64, scratch_operands = 0 : i64, tpu.core_type = #tpu.core_type<tc>, window_params = [{transform_indices = @transform_0, window_bounds = array<i64: 2, 32>}, {transform_indices = @transform_1, window_bounds = array<i64: 16, 4>}, {pipeline_mode = #tpu.pipeline_mode<synchronous>, transform_indices = @transform_2, window_bounds = array<i64: 4, 32>}, {pipeline_mode = #tpu.pipeline_mode<synchronous>, transform_indices = @transform_3, window_bounds = array<i64: 1, 32>}, {pipeline_mode = #tpu.pipeline_mode<synchronous>, transform_indices = @transform_4, window_bounds = array<i64: 32, 32>}, {pipeline_mode = #tpu.pipeline_mode<synchronous>, transform_indices = @transform_5, window_bounds = array<i64: 1, 32>}, {pipeline_mode = #tpu.pipeline_mode<synchronous>, transform_indices = @transform_6, window_bounds = array<i64: 32, 32>}, {pipeline_mode = #tpu.pipeline_mode<synchronous>, transform_indices = @transform_7, window_bounds = array<i64: 1, 32>}, {pipeline_mode = #tpu.pipeline_mode<synchronous>, transform_indices = @transform_8, window_bounds = array<i64: 32, 32>}, {pipeline_mode = #tpu.pipeline_mode<synchronous>, transform_indices = @transform_9, window_bounds = array<i64: 1, 32>}, {transform_indices = @transform_10, window_bounds = array<i64: 2, 8>}]} {
    %c0 = arith.constant 0 : index
    %c0_0 = arith.constant 0 : index
    %0 = vector.load %arg2[%c0, %c0_0] : memref<16x4xf32, #tpu.memory_space<vmem>>, vector<16x4xf32>
    %c0_1 = arith.constant 0 : index
    %c0_2 = arith.constant 0 : index
    %1 = vector.load %arg3[%c0_1, %c0_2] : memref<4x32xf32, #tpu.memory_space<vmem>>, vector<4x32xf32>
    %cst = arith.constant dense<0.000000e+00> : vector<16x32xf32>
    %2 = tpu.matmul %0, %1, %cst {dimension_numbers = #tpu.dot_dimension_numbers<[1], [0], [0], [1], [0, 0, 1, 1], [], []>} : vector<16x4xf32>, vector<4x32xf32>, vector<16x32xf32> -> vector<16x32xf32>
    %c0_3 = arith.constant 0 : index
    %c0_4 = arith.constant 0 : index
    %3 = vector.load %arg4[%c0_3, %c0_4] : memref<1x32xf32, #tpu.memory_space<vmem>>, vector<1x32xf32>
    %4 = vector.broadcast %3 : vector<1x32xf32> to vector<16x32xf32>
    %5 = arith.addf %2, %4 : vector<16x32xf32>
    %cst_5 = arith.constant 0.000000e+00 : f32
    %6 = vector.broadcast %cst_5 : f32 to vector<16x32xf32>
    %7 = arith.maximumf %5, %6 : vector<16x32xf32>
    %c0_6 = arith.constant 0 : index
    %c0_7 = arith.constant 0 : index
    %8 = vector.load %arg5[%c0_6, %c0_7] : memref<32x32xf32, #tpu.memory_space<vmem>>, vector<32x32xf32>
    %cst_8 = arith.constant dense<0.000000e+00> : vector<16x32xf32>
    %9 = tpu.matmul %7, %8, %cst_8 {dimension_numbers = #tpu.dot_dimension_numbers<[1], [0], [0], [1], [0, 0, 1, 1], [], []>} : vector<16x32xf32>, vector<32x32xf32>, vector<16x32xf32> -> vector<16x32xf32>
    %c0_9 = arith.constant 0 : index
    %c0_10 = arith.constant 0 : index
    %10 = vector.load %arg6[%c0_9, %c0_10] : memref<1x32xf32, #tpu.memory_space<vmem>>, vector<1x32xf32>
    %11 = vector.broadcast %10 : vector<1x32xf32> to vector<16x32xf32>
    %12 = arith.addf %9, %11 : vector<16x32xf32>
    %c0_11 = arith.constant 0 : index
    %c0_12 = arith.constant 0 : index
    %13 = vector.load %arg1[%c0_11, %c0_12] : memref<2x32xf32, #tpu.memory_space<vmem>>, vector<2x32xf32>
    %14 = vector.shape_cast %13 : vector<2x32xf32> to vector<2x1x32xf32>
    %c0_13 = arith.constant 0 : index
    %c0_14 = arith.constant 0 : index
    %15 = vector.load %arg7[%c0_13, %c0_14] : memref<32x32xf32, #tpu.memory_space<vmem>>, vector<32x32xf32>
    %cst_15 = arith.constant dense<0.000000e+00> : vector<16x32xf32>
    %16 = tpu.matmul %12, %15, %cst_15 {dimension_numbers = #tpu.dot_dimension_numbers<[1], [0], [0], [1], [0, 0, 1, 1], [], []>} : vector<16x32xf32>, vector<32x32xf32>, vector<16x32xf32> -> vector<16x32xf32>
    %c0_16 = arith.constant 0 : index
    %c0_17 = arith.constant 0 : index
    %17 = vector.load %arg8[%c0_16, %c0_17] : memref<1x32xf32, #tpu.memory_space<vmem>>, vector<1x32xf32>
    %18 = vector.broadcast %17 : vector<1x32xf32> to vector<16x32xf32>
    %19 = arith.addf %16, %18 : vector<16x32xf32>
    %c0_18 = arith.constant 0 : index
    %c0_19 = arith.constant 0 : index
    %20 = vector.load %arg9[%c0_18, %c0_19] : memref<32x32xf32, #tpu.memory_space<vmem>>, vector<32x32xf32>
    %cst_20 = arith.constant dense<0.000000e+00> : vector<16x32xf32>
    %21 = tpu.matmul %12, %20, %cst_20 {dimension_numbers = #tpu.dot_dimension_numbers<[1], [0], [0], [1], [0, 0, 1, 1], [], []>} : vector<16x32xf32>, vector<32x32xf32>, vector<16x32xf32> -> vector<16x32xf32>
    %c0_21 = arith.constant 0 : index
    %c0_22 = arith.constant 0 : index
    %22 = vector.load %arg10[%c0_21, %c0_22] : memref<1x32xf32, #tpu.memory_space<vmem>>, vector<1x32xf32>
    %23 = vector.broadcast %22 : vector<1x32xf32> to vector<16x32xf32>
    %24 = arith.addf %21, %23 : vector<16x32xf32>
    %25 = vector.shape_cast %19 : vector<16x32xf32> to vector<2x8x32xf32>
    %26 = math.exp %25 : vector<2x8x32xf32>
    %27 = vector.broadcast %14 : vector<2x1x32xf32> to vector<2x8x32xf32>
    %28 = arith.mulf %27, %26 : vector<2x8x32xf32>
    %29 = vector.shape_cast %24 : vector<16x32xf32> to vector<2x8x32xf32>
    %30 = arith.addf %28, %29 : vector<2x8x32xf32>
    %cst_23 = arith.constant dense<0.000000e+00> : vector<2x8xf32>
    %31 = vector.multi_reduction <add>, %25, %cst_23 [2] : vector<2x8x32xf32> to vector<2x8xf32>
    %32 = arith.mulf %30, %30 : vector<2x8x32xf32>
    %cst_24 = arith.constant dense<0.000000e+00> : vector<2x8xf32>
    %33 = vector.multi_reduction <add>, %32, %cst_24 [2] : vector<2x8x32xf32> to vector<2x8xf32>
    %cst_25 = arith.constant -5.000000e-01 : f32
    %34 = vector.broadcast %cst_25 : f32 to vector<2x8xf32>
    %35 = arith.mulf %34, %33 : vector<2x8xf32>
    %cst_26 = arith.constant 29.4060326 : f32
    %36 = vector.broadcast %cst_26 : f32 to vector<2x8xf32>
    %37 = arith.subf %35, %36 : vector<2x8xf32>
    %38 = arith.addf %37, %31 : vector<2x8xf32>
    %cst_27 = arith.constant dense<0xFF800000> : vector<2xf32>
    %39 = vector.multi_reduction <maximumf>, %38, %cst_27 [1] : vector<2x8xf32> to vector<2xf32>
    %40 = vector.shape_cast %39 : vector<2xf32> to vector<2x1xf32>
    %41 = vector.broadcast %40 : vector<2x1xf32> to vector<2x8xf32>
    %42 = arith.subf %38, %41 : vector<2x8xf32>
    %c0_28 = arith.constant 0 : index
    %c0_29 = arith.constant 0 : index
    %43 = vector.load %arg11[%c0_28, %c0_29] : memref<2x8xf32, #tpu.memory_space<vmem>>, vector<2x8xf32>
    tpu.vector_store %arg11[%c0_28, %c0_29], %42 {strides = array<i32>} : memref<2x8xf32, #tpu.memory_space<vmem>>, vector<2x8xf32>,
    return
  }
  func.func @transform_0(%arg0: i32) -> (i32, i32) {
    %c0_i32 = arith.constant 0 : i32
    %c0_i32_0 = arith.constant 0 : i32
    return %arg0, %c0_i32 : i32, i32
  }
  func.func @transform_1(%arg0: i32) -> (i32, i32) {
    %c0_i32 = arith.constant 0 : i32
    %c0_i32_0 = arith.constant 0 : i32
    return %arg0, %c0_i32 : i32, i32
  }
  func.func @transform_2(%arg0: i32) -> (i32, i32) {
    %c0_i32 = arith.constant 0 : i32
    %c0_i32_0 = arith.constant 0 : i32
    %c0_i32_1 = arith.constant 0 : i32
    return %c0_i32, %c0_i32_0 : i32, i32
  }
  func.func @transform_3(%arg0: i32) -> (i32, i32) {
    %c0_i32 = arith.constant 0 : i32
    %c0_i32_0 = arith.constant 0 : i32
    %c0_i32_1 = arith.constant 0 : i32
    return %c0_i32, %c0_i32_0 : i32, i32
  }
  func.func @transform_4(%arg0: i32) -> (i32, i32) {
    %c0_i32 = arith.constant 0 : i32
    %c0_i32_0 = arith.constant 0 : i32
    %c0_i32_1 = arith.constant 0 : i32
    return %c0_i32, %c0_i32_0 : i32, i32
  }
  func.func @transform_5(%arg0: i32) -> (i32, i32) {
    %c0_i32 = arith.constant 0 : i32
    %c0_i32_0 = arith.constant 0 : i32
    %c0_i32_1 = arith.constant 0 : i32
    return %c0_i32, %c0_i32_0 : i32, i32
  }
  func.func @transform_6(%arg0: i32) -> (i32, i32) {
    %c0_i32 = arith.constant 0 : i32
    %c0_i32_0 = arith.constant 0 : i32
    %c0_i32_1 = arith.constant 0 : i32
    return %c0_i32, %c0_i32_0 : i32, i32
  }
  func.func @transform_7(%arg0: i32) -> (i32, i32) {
    %c0_i32 = arith.constant 0 : i32
    %c0_i32_0 = arith.constant 0 : i32
    %c0_i32_1 = arith.constant 0 : i32
    return %c0_i32, %c0_i32_0 : i32, i32
  }
  func.func @transform_8(%arg0: i32) -> (i32, i32) {
    %c0_i32 = arith.constant 0 : i32
    %c0_i32_0 = arith.constant 0 : i32
    %c0_i32_1 = arith.constant 0 : i32
    return %c0_i32, %c0_i32_0 : i32, i32
  }
  func.func @transform_9(%arg0: i32) -> (i32, i32) {
    %c0_i32 = arith.constant 0 : i32
    %c0_i32_0 = arith.constant 0 : i32
    %c0_i32_1 = arith.constant 0 : i32
    return %c0_i32, %c0_i32_0 : i32, i32
  }
  func.func @transform_10(%arg0: i32) -> (i32, i32) {
    %c0_i32 = arith.constant 0 : i32
    %c0_i32_0 = arith.constant 0 : i32
    return %arg0, %c0_i32 : i32, i32
  }
}

</mosaic_0001>

<llo_original>
// kernel: tpu_custom_call.1
$region0: #{tpu_custom_call.1}
  #allocation0 [shape = 'u32[]', space=smem, size = 0x4, offset = 0x4, fixed_abs, tag = 'smem constant byte address 0x4 - core index']
  #allocation1 [shape = 'u32[144,128]{1,0:T(1,128)}', space=vmem, size = 0x12000, scoped, tag = 'internal scratch']
  %s0 = inlined_call_operand.vmem [shape: f32[2,32], index: 0, kind: input, shape index: {}]
  %s1 = inlined_call_operand.vmem [shape: f32[16,4], index: 1, kind: input, shape index: {}]
  %s2 = inlined_call_operand.hbm [shape: f32[4,32], index: 2, kind: input, shape index: {}]
  %s3 = inlined_call_operand.hbm [shape: f32[1,32], index: 3, kind: input, shape index: {}]
  %s4 = inlined_call_operand.hbm [shape: f32[32,32], index: 4, kind: input, shape index: {}]
  %s5 = inlined_call_operand.hbm [shape: f32[1,32], index: 5, kind: input, shape index: {}]
  %s6 = inlined_call_operand.hbm [shape: f32[32,32], index: 6, kind: input, shape index: {}]
  %s7 = inlined_call_operand.hbm [shape: f32[1,32], index: 7, kind: input, shape index: {}]
  %s8 = inlined_call_operand.vmem [shape: f32[32,32], index: 8, kind: input, shape index: {}]
  %s9 = inlined_call_operand.vmem [shape: f32[1,32], index: 9, kind: input, shape index: {}]
  %s10 = inlined_call_operand.hbm [shape: f32[2,8], index: 10, kind: output, shape index: {}]
  %s11 = sld [smem:[#allocation0]]
  $region74: #{tpu_custom_call.1} parent=0
    _
  %s13 = ssub.s32 1, %s11
  %s14 = scalar_select 0, %s13, %s11
  $region1: #{tpu_custom_call.1} parent=0
    #allocation2 [shape = 'u8[2048]{0}', space=vmem, size = 0x800, scoped, tag = 'input window, operand 2, single buffered']
    #allocation3 [shape = 's32[1]{0}', space=sflag, size = 0x4, scoped, tag = 'scoped memory for tpu_custom_call.1']
    #allocation4 [shape = 's32[1]{0}', space=sflag, size = 0x4, scoped, tag = 'scoped memory for tpu_custom_call.1']
    #allocation5 [shape = 'u8[512]{0}', space=vmem, size = 0x400, scoped, tag = 'input window, operand 3, single buffered']
    #allocation6 [shape = 's32[1]{0}', space=sflag, size = 0x4, scoped, tag = 'scoped memory for tpu_custom_call.1']
    #allocation7 [shape = 'u8[16384]{0}', space=vmem, size = 0x4000, scoped, tag = 'input window, operand 4, single buffered']
    #allocation8 [shape = 'u8[512]{0}', space=vmem, size = 0x400, scoped, tag = 'input window, operand 5, single buffered']
    #allocation9 [shape = 's32[1]{0}', space=sflag, size = 0x4, scoped, tag = 'scoped memory for tpu_custom_call.1']
    #allocation10 [shape = 'u8[16384]{0}', space=vmem, size = 0x4000, scoped, tag = 'input window, operand 6, single buffered']
    #allocation11 [shape = 'u8[512]{0}', space=vmem, size = 0x400, scoped, tag = 'input window, operand 7, single buffered']
    #allocation12 [shape = 's32[1]{0}', space=sflag, size = 0x4, scoped, tag = 'scoped memory for tpu_custom_call.1']
    #allocation13 [shape = 'u8[1024]{0}', space=vmem, size = 0x400, scoped, tag = 'output window, operand 0, single buffered']
    %15 = vsyncpa [#allocation3], 0
    %16 = vsyncpa [#allocation6], 0
    %17 = vsyncpa [#allocation9], 0
    %18 = vsyncpa [#allocation12], 0
    %19 = vsyncpa [#allocation4], 0
    // Predicated region
    $region2: #{tpu_custom_call.1} parent=1 // pred_check
      _
    $region3: #{tpu_custom_call.1} parent=1 // pred_check_branch
      %21 = sbr.rel (0) target = $region5
    $region4: #{tpu_custom_call.1} parent=1 // pred_region
      _
    $region5: #{tpu_custom_call.1} parent=1 // pred_fallthru
      _
    // Predicated region
    $region6: #{tpu_custom_call.1} parent=1 // pred_check
      _
    $region7: #{tpu_custom_call.1} parent=1 // pred_check_branch
      %23 = sbr.rel (0) target = $region9
    $region8: #{tpu_custom_call.1} parent=1 // pred_region
      _
    $region9: #{tpu_custom_call.1} parent=1 // pred_fallthru
      _
    // Predicated region
    $region10: #{tpu_custom_call.1} parent=1 // pred_check
      _
    $region11: #{tpu_custom_call.1} parent=1 // pred_check_branch
      %25 = sbr.rel (0) target = $region13
    $region12: #{tpu_custom_call.1} parent=1 // pred_region
      %s27 = ssub.s32 64, 64
      %28 = vsyncadd [#allocation3], %s27
      %s30 = sshll.u32 [#allocation2], 4
      %s31 = int_to_ptr.vmem [resolvable:$true] %s30
      %33 = dma.hbm_to_vmem [thread:$0]  %s2, 64, %s31, [#allocation3]
    $region13: #{tpu_custom_call.1} parent=1 // pred_fallthru
      _
    // Predicated region
    $region14: #{tpu_custom_call.1} parent=1 // pred_check
      _
    $region15: #{tpu_custom_call.1} parent=1 // pred_check_branch
      %35 = sbr.rel (0) target = $region17
    $region16: #{tpu_custom_call.1} parent=1 // pred_region
      %s37 = ssub.s32 16, 16
      %38 = vsyncadd [#allocation6], %s37
      %s40 = sshll.u32 [#allocation5], 4
      %s41 = int_to_ptr.vmem [resolvable:$true] %s40
      %43 = dma.hbm_to_vmem [thread:$0]  %s3, 16, %s41, [#allocation6]
    $region17: #{tpu_custom_call.1} parent=1 // pred_fallthru
      _
    // Predicated region
    $region18: #{tpu_custom_call.1} parent=1 // pred_check
      _
    $region19: #{tpu_custom_call.1} parent=1 // pred_check_branch
      %45 = sbr.rel (0) target = $region21
    $region20: #{tpu_custom_call.1} parent=1 // pred_region
      %s47 = ssub.s32 512, 512
      %48 = vsyncadd [#allocation6], %s47
      %s49 = sshll.u32 [#allocation7], 4
      %s50 = int_to_ptr.vmem [resolvable:$true] %s49
      %55 = dma.hbm_to_vmem [thread:$0]  %s4, 512, %s50, [#allocation6], 128, 128, 8
    $region21: #{tpu_custom_call.1} parent=1 // pred_fallthru
      _
    // Predicated region
    $region22: #{tpu_custom_call.1} parent=1 // pred_check
      _
    $region23: #{tpu_custom_call.1} parent=1 // pred_check_branch
      %57 = sbr.rel (0) target = $region25
    $region24: #{tpu_custom_call.1} parent=1 // pred_region
      %s59 = ssub.s32 16, 16
      %60 = vsyncadd [#allocation9], %s59
      %s62 = sshll.u32 [#allocation8], 4
      %s63 = int_to_ptr.vmem [resolvable:$true] %s62
      %65 = dma.hbm_to_vmem [thread:$0]  %s5, 16, %s63, [#allocation9]
    $region25: #{tpu_custom_call.1} parent=1 // pred_fallthru
      _
    // Predicated region
    $region26: #{tpu_custom_call.1} parent=1 // pred_check
      _
    $region27: #{tpu_custom_call.1} parent=1 // pred_check_branch
      %67 = sbr.rel (0) target = $region29
    $region28: #{tpu_custom_call.1} parent=1 // pred_region
      %s69 = ssub.s32 512, 512
      %70 = vsyncadd [#allocation9], %s69
      %s71 = sshll.u32 [#allocation10], 4
      %s72 = int_to_ptr.vmem [resolvable:$true] %s71
      %77 = dma.hbm_to_vmem [thread:$0]  %s6, 512, %s72, [#allocation9], 128, 128, 8
    $region29: #{tpu_custom_call.1} parent=1 // pred_fallthru
      _
    // Predicated region
    $region30: #{tpu_custom_call.1} parent=1 // pred_check
      _
    $region31: #{tpu_custom_call.1} parent=1 // pred_check_branch
      %79 = sbr.rel (0) target = $region33
    $region32: #{tpu_custom_call.1} parent=1 // pred_region
      %s81 = ssub.s32 16, 16
      %82 = vsyncadd [#allocation12], %s81
      %s84 = sshll.u32 [#allocation11], 4
      %s85 = int_to_ptr.vmem [resolvable:$true] %s84
      %87 = dma.hbm_to_vmem [thread:$0]  %s7, 16, %s85, [#allocation12]
    $region33: #{tpu_custom_call.1} parent=1 // pred_fallthru
      _
    // Predicated region
    $region34: #{tpu_custom_call.1} parent=1 // pred_check
      _
    $region35: #{tpu_custom_call.1} parent=1 // pred_check_branch
      %89 = sbr.rel (0) target = $region37
    $region36: #{tpu_custom_call.1} parent=1 // pred_region
      _
    $region37: #{tpu_custom_call.1} parent=1 // pred_fallthru
      _
    // Predicated region
    $region38: #{tpu_custom_call.1} parent=1 // pred_check
      _
    $region39: #{tpu_custom_call.1} parent=1 // pred_check_branch
      %91 = sbr.rel (0) target = $region41
    $region40: #{tpu_custom_call.1} parent=1 // pred_region
      _
    $region41: #{tpu_custom_call.1} parent=1 // pred_fallthru
      _
    // Predicated region
    $region42: #{tpu_custom_call.1} parent=1 // pred_check
      _
    $region43: #{tpu_custom_call.1} parent=1 // pred_check_branch
      %93 = sbr.rel (0) target = $region45
    $region44: #{tpu_custom_call.1} parent=1 // pred_region
      %94 = dma.done [#allocation3], 64
    $region45: #{tpu_custom_call.1} parent=1 // pred_fallthru
      _
    // Predicated region
    $region46: #{tpu_custom_call.1} parent=1 // pred_check
      _
    $region47: #{tpu_custom_call.1} parent=1 // pred_check_branch
      %96 = sbr.rel (0) target = $region49
    $region48: #{tpu_custom_call.1} parent=1 // pred_region
      %97 = dma.done [#allocation6], 16
    $region49: #{tpu_custom_call.1} parent=1 // pred_fallthru
      _
    // Predicated region
    $region50: #{tpu_custom_call.1} parent=1 // pred_check
      _
    $region51: #{tpu_custom_call.1} parent=1 // pred_check_branch
      %99 = sbr.rel (0) target = $region53
    $region52: #{tpu_custom_call.1} parent=1 // pred_region
      %100 = dma.done [#allocation6], 512
    $region53: #{tpu_custom_call.1} parent=1 // pred_fallthru
      _
    // Predicated region
    $region54: #{tpu_custom_call.1} parent=1 // pred_check
      _
    $region55: #{tpu_custom_call.1} parent=1 // pred_check_branch
      %102 = sbr.rel (0) target = $region57
    $region56: #{tpu_custom_call.1} parent=1 // pred_region
      %103 = dma.done [#allocation9], 16
    $region57: #{tpu_custom_call.1} parent=1 // pred_fallthru
      _
    // Predicated region
    $region58: #{tpu_custom_call.1} parent=1 // pred_check
      _
    $region59: #{tpu_custom_call.1} parent=1 // pred_check_branch
      %105 = sbr.rel (0) target = $region61
    $region60: #{tpu_custom_call.1} parent=1 // pred_region
      %106 = dma.done [#allocation9], 512
    $region61: #{tpu_custom_call.1} parent=1 // pred_fallthru
      _
    // Predicated region
    $region62: #{tpu_custom_call.1} parent=1 // pred_check
      _
    $region63: #{tpu_custom_call.1} parent=1 // pred_check_branch
      %108 = sbr.rel (0) target = $region65
    $region64: #{tpu_custom_call.1} parent=1 // pred_region
      %109 = dma.done [#allocation12], 16
    $region65: #{tpu_custom_call.1} parent=1 // pred_fallthru
      _
    %v110 = vld [vmem:[%s1] sm:$0xff]
    %v111 = vld [vmem:[%s1 + $0x8] sm:$0xff]
    %v112 = vld [vmem:[#allocation2] sm:$0xf]
    %v113 = vld [vmem:[#allocation5] sm:$0x1]
    %v115 = vlaneseq
    %v116 = vshrl.u32 %v115, 7
    %v117 = vsub.s32 0, %v116
    %v118 = vrot.slane %v113, %v117
    %vm120 = vcmask 31744
    %v122 = vsel %vm120, %v110, 0
    %v125 = vsel %vm120, %v111, 0
    %vm127 = vcmask 1043456
    %v129 = vsel %vm127, %v112, 0
    %131 = vmatprep.subr.mxu0 0.0
    %132 = vmatpush1.msra.mxu0 0.0
    %133 = vmatprep.subr.mxu0 0.0
    %134 = vmatpush1.msra.mxu0 0.0
    %135 = vmatprep.subr.mxu0 0.0
    %136 = vmatpush1.msra.mxu0 0.0
    %137 = vmatprep.subr.mxu0 0.0
    %138 = vmatpush1.msra.mxu0 0.0
    %139 = vmatprep.subr.mxu0 0.0
    %140 = vmatpush1.msra.mxu0 0.0
    %141 = vmatprep.subr.mxu0 0.0
    %142 = vmatpush1.msra.mxu0 0.0
    %143 = vmatprep.subr.mxu0 0.0
    %144 = vmatpush1.msra.mxu0 0.0
    %145 = vmatprep.subr.mxu0 0.0
    %146 = vmatpush1.msra.mxu0 0.0
    %147 = vmatprep.subr.mxu0 0.0
    %148 = vmatpush1.msra.mxu0 0.0
    %149 = vmatprep.subr.mxu0 0.0
    %150 = vmatpush1.msra.mxu0 0.0
    %151 = vmatprep.subr.mxu0 0.0
    %152 = vmatpush1.msra.mxu0 0.0
    %153 = vmatprep.subr.mxu0 0.0
    %154 = vmatpush1.msra.mxu0 0.0
    %155 = vmatprep.subr.mxu0 0.0
    %156 = vmatpush1.msra.mxu0 0.0
    %157 = vmatprep.subr.mxu0 0.0
    %158 = vmatpush1.msra.mxu0 0.0
    %159 = vmatprep.subr.mxu0 0.0
    %160 = vmatpush1.msra.mxu0 0.0
    %161 = vmatprep.subr.mxu0 0.0
    %162 = vmatpush1.msra.mxu0 %v129
    %163 = vmatprep.subr.mxu0 0.0
    %164 = vmatpush2.msra.mxu0 0.0
    %165 = vmatprep.subr.mxu0 0.0
    %166 = vmatpush2.msra.mxu0 0.0
    %167 = vmatprep.subr.mxu0 0.0
    %168 = vmatpush2.msra.mxu0 0.0
    %169 = vmatprep.subr.mxu0 0.0
    %170 = vmatpush2.msra.mxu0 0.0
    %171 = vmatprep.subr.mxu0 0.0
    %172 = vmatpush2.msra.mxu0 0.0
    %173 = vmatprep.subr.mxu0 0.0
    %174 = vmatpush2.msra.mxu0 0.0
    %175 = vmatprep.subr.mxu0 0.0
    %176 = vmatpush2.msra.mxu0 0.0
    %177 = vmatprep.subr.mxu0 0.0
    %178 = vmatpush2.msra.mxu0 0.0
    %179 = vmatprep.subr.mxu0 0.0
    %180 = vmatpush2.msra.mxu0 0.0
    %181 = vmatprep.subr.mxu0 0.0
    %182 = vmatpush2.msra.mxu0 0.0
    %183 = vmatprep.subr.mxu0 0.0
    %184 = vmatpush2.msra.mxu0 0.0
    %185 = vmatprep.subr.mxu0 0.0
    %186 = vmatpush2.msra.mxu0 0.0
    %187 = vmatprep.subr.mxu0 0.0
    %188 = vmatpush2.msra.mxu0 0.0
    %189 = vmatprep.subr.mxu0 0.0
    %190 = vmatpush2.msra.mxu0 0.0
    %191 = vmatprep.subr.mxu0 0.0
    %192 = vmatpush2.msra.mxu0 0.0
    %193 = vmatprep.subr.mxu0 0.0
    %194 = vmatpush2.msra.mxu0 0.0
    %195 = vmatprep.mubr.f32.mxu0 0.0
    %196 = vmatmul.mubr.f32.gmra.mxu0 %v122
    %v197 = vpop.f32.mrf.mxu0
    %v198 = vadd.f32 %v118, %v197
    %v199 = vpop.f32.mrf.mxu0
    %200 = vmatprep.mubr.f32.mxu0 0.0
    %201 = vmatmul.mubr.f32.gmra.mxu0 %v125
    %v202 = vpop.f32.mrf.mxu0
    %v203 = vadd.f32 %v118, %v202
    %v204 = vpop.f32.mrf.mxu0
    %205 = vdwg.mxu0
    %v206 = vmax.f32 %v198, 0.0
    %v207 = vmax.f32 %v203, 0.0
    %v208 = vld [vmem:[#allocation7] sm:$0xff]
    %v209 = vld [vmem:[#allocation7 + $0x8] sm:$0xff]
    %v210 = vld [vmem:[#allocation7 + $0x10] sm:$0xff]
    %v211 = vld [vmem:[#allocation7 + $0x18] sm:$0xff]
    %v212 = vld [vmem:[#allocation8] sm:$0x1]
    %v214 = vlaneseq
    %v215 = vshrl.u32 %v214, 7
    %v216 = vsub.s32 0, %v215
    %v217 = vrot.slane %v212, %v216
    %vm219 = vcmask 261120
    %v221 = vsel %vm219, %v206, 0
    %v224 = vsel %vm219, %v207, 0
    %226 = vmatprep.subr.mxu0 0.0
    %227 = vmatpush1.msra.mxu0 0.0
    %228 = vmatprep.subr.mxu0 0.0
    %229 = vmatpush1.msra.mxu0 0.0
    %230 = vmatprep.subr.mxu0 0.0
    %231 = vmatpush1.msra.mxu0 0.0
    %232 = vmatprep.subr.mxu0 0.0
    %233 = vmatpush1.msra.mxu0 0.0
    %234 = vmatprep.subr.mxu0 0.0
    %235 = vmatpush1.msra.mxu0 0.0
    %236 = vmatprep.subr.mxu0 0.0
    %237 = vmatpush1.msra.mxu0 0.0
    %238 = vmatprep.subr.mxu0 0.0
    %239 = vmatpush1.msra.mxu0 0.0
    %240 = vmatprep.subr.mxu0 0.0
    %241 = vmatpush1.msra.mxu0 0.0
    %242 = vmatprep.subr.mxu0 0.0
    %243 = vmatpush1.msra.mxu0 0.0
    %244 = vmatprep.subr.mxu0 0.0
    %245 = vmatpush1.msra.mxu0 0.0
    %246 = vmatprep.subr.mxu0 0.0
    %247 = vmatpush1.msra.mxu0 0.0
    %248 = vmatprep.subr.mxu0 0.0
    %249 = vmatpush1.msra.mxu0 0.0
    %250 = vmatprep.subr.mxu0 0.0
    %251 = vmatpush1.msra.mxu0 %v211
    %252 = vmatprep.subr.mxu0 0.0
    %253 = vmatpush1.msra.mxu0 %v210
    %254 = vmatprep.subr.mxu0 0.0
    %255 = vmatpush1.msra.mxu0 %v209
    %256 = vmatprep.subr.mxu0 0.0
    %257 = vmatpush1.msra.mxu0 %v208
    %258 = vmatprep.subr.mxu0 0.0
    %259 = vmatpush2.msra.mxu0 0.0
    %260 = vmatprep.subr.mxu0 0.0
    %261 = vmatpush2.msra.mxu0 0.0
    %262 = vmatprep.subr.mxu0 0.0
    %263 = vmatpush2.msra.mxu0 0.0
    %264 = vmatprep.subr.mxu0 0.0
    %265 = vmatpush2.msra.mxu0 0.0
    %266 = vmatprep.subr.mxu0 0.0
    %267 = vmatpush2.msra.mxu0 0.0
    %268 = vmatprep.subr.mxu0 0.0
    %269 = vmatpush2.msra.mxu0 0.0
    %270 = vmatprep.subr.mxu0 0.0
    %271 = vmatpush2.msra.mxu0 0.0
    %272 = vmatprep.subr.mxu0 0.0
    %273 = vmatpush2.msra.mxu0 0.0
    %274 = vmatprep.subr.mxu0 0.0
    %275 = vmatpush2.msra.mxu0 0.0
    %276 = vmatprep.subr.mxu0 0.0
    %277 = vmatpush2.msra.mxu0 0.0
    %278 = vmatprep.subr.mxu0 0.0
    %279 = vmatpush2.msra.mxu0 0.0
    %280 = vmatprep.subr.mxu0 0.0
    %281 = vmatpush2.msra.mxu0 0.0
    %282 = vmatprep.subr.mxu0 0.0
    %283 = vmatpush2.msra.mxu0 0.0
    %284 = vmatprep.subr.mxu0 0.0
    %285 = vmatpush2.msra.mxu0 0.0
    %286 = vmatprep.subr.mxu0 0.0
    %287 = vmatpush2.msra.mxu0 0.0
    %288 = vmatprep.subr.mxu0 0.0
    %289 = vmatpush2.msra.mxu0 0.0
    %290 = vmatprep.mubr.f32.mxu0 0.0
    %291 = vmatmul.mubr.f32.gmra.mxu0 %v221
    %v292 = vpop.f32.mrf.mxu0
    %v293 = vadd.f32 %v217, %v292
    %v294 = vpop.f32.mrf.mxu0
    %295 = vmatprep.mubr.f32.mxu0 0.0
    %296 = vmatmul.mubr.f32.gmra.mxu0 %v224
    %v297 = vpop.f32.mrf.mxu0
    %v298 = vadd.f32 %v217, %v297
    %v299 = vpop.f32.mrf.mxu0
    %300 = vdwg.mxu0
    %v301 = vld [vmem:[%s0] sm:$0x3]
    %v304 = vunpack.c.l.s4 1966171168
    %v305 = vunpack.c.0.s8 %v304
    %v306 = vlaneseq
    %v307 = vshrl.u32 %v306, 7
    %v308 = vsub.s32 %v305, %v307
    %v309 = vrot.slane %v301, %v308
    %v310 = vcombine.high %v309, %v309
    %v312 = vunpack.c.l.s4 1966171168
    %v313 = vunpack.c.0.s8 %v312
    %v314 = vlaneseq
    %v315 = vshrl.u32 %v314, 7
    %v316 = vsub.s32 %v313, %v315
    %v317 = vrot.slane %v309, %v316
    %v319 = vunpack.c.l.s4 1966171168
    %v320 = vunpack.c.0.s8 %v319
    %v321 = vlaneseq
    %v322 = vshrl.u32 %v321, 7
    %v323 = vsub.s32 %v320, %v322
    %v324 = vrot.slane %v310, %v323
    %v325 = vld [vmem:[#allocation10] sm:$0xff]
    %v326 = vld [vmem:[#allocation10 + $0x8] sm:$0xff]
    %v327 = vld [vmem:[#allocation10 + $0x10] sm:$0xff]
    %v328 = vld [vmem:[#allocation10 + $0x18] sm:$0xff]
    %v329 = vld [vmem:[#allocation11] sm:$0x1]
    %v331 = vlaneseq
    %v332 = vshrl.u32 %v331, 7
    %v333 = vsub.s32 0, %v332
    %v334 = vrot.slane %v329, %v333
    %v337 = vsel %vm219, %v293, 0
    %v340 = vsel %vm219, %v298, 0
    %342 = vmatprep.subr.mxu0 0.0
    %343 = vmatpush1.msra.mxu0 0.0
    %344 = vmatprep.subr.mxu0 0.0
    %345 = vmatpush1.msra.mxu0 0.0
    %346 = vmatprep.subr.mxu0 0.0
    %347 = vmatpush1.msra.mxu0 0.0
    %348 = vmatprep.subr.mxu0 0.0
    %349 = vmatpush1.msra.mxu0 0.0
    %350 = vmatprep.subr.mxu0 0.0
    %351 = vmatpush1.msra.mxu0 0.0
    %352 = vmatprep.subr.mxu0 0.0
    %353 = vmatpush1.msra.mxu0 0.0
    %354 = vmatprep.subr.mxu0 0.0
    %355 = vmatpush1.msra.mxu0 0.0
    %356 = vmatprep.subr.mxu0 0.0
    %357 = vmatpush1.msra.mxu0 0.0
    %358 = vmatprep.subr.mxu0 0.0
    %359 = vmatpush1.msra.mxu0 0.0
    %360 = vmatprep.subr.mxu0 0.0
    %361 = vmatpush1.msra.mxu0 0.0
    %362 = vmatprep.subr.mxu0 0.0
    %363 = vmatpush1.msra.mxu0 0.0
    %364 = vmatprep.subr.mxu0 0.0
    %365 = vmatpush1.msra.mxu0 0.0
    %366 = vmatprep.subr.mxu0 0.0
    %367 = vmatpush1.msra.mxu0 %v328
    %368 = vmatprep.subr.mxu0 0.0
    %369 = vmatpush1.msra.mxu0 %v327
    %370 = vmatprep.subr.mxu0 0.0
    %371 = vmatpush1.msra.mxu0 %v326
    %372 = vmatprep.subr.mxu0 0.0
    %373 = vmatpush1.msra.mxu0 %v325
    %374 = vmatprep.subr.mxu0 0.0
    %375 = vmatpush2.msra.mxu0 0.0
    %376 = vmatprep.subr.mxu0 0.0
    %377 = vmatpush2.msra.mxu0 0.0
    %378 = vmatprep.subr.mxu0 0.0
    %379 = vmatpush2.msra.mxu0 0.0
    %380 = vmatprep.subr.mxu0 0.0
    %381 = vmatpush2.msra.mxu0 0.0
    %382 = vmatprep.subr.mxu0 0.0
    %383 = vmatpush2.msra.mxu0 0.0
    %384 = vmatprep.subr.mxu0 0.0
    %385 = vmatpush2.msra.mxu0 0.0
    %386 = vmatprep.subr.mxu0 0.0
    %387 = vmatpush2.msra.mxu0 0.0
    %388 = vmatprep.subr.mxu0 0.0
    %389 = vmatpush2.msra.mxu0 0.0
    %390 = vmatprep.subr.mxu0 0.0
    %391 = vmatpush2.msra.mxu0 0.0
    %392 = vmatprep.subr.mxu0 0.0
    %393 = vmatpush2.msra.mxu0 0.0
    %394 = vmatprep.subr.mxu0 0.0
    %395 = vmatpush2.msra.mxu0 0.0
    %396 = vmatprep.subr.mxu0 0.0
    %397 = vmatpush2.msra.mxu0 0.0
    %398 = vmatprep.subr.mxu0 0.0
    %399 = vmatpush2.msra.mxu0 0.0
    %400 = vmatprep.subr.mxu0 0.0
    %401 = vmatpush2.msra.mxu0 0.0
    %402 = vmatprep.subr.mxu0 0.0
    %403 = vmatpush2.msra.mxu0 0.0
    %404 = vmatprep.subr.mxu0 0.0
    %405 = vmatpush2.msra.mxu0 0.0
    %406 = vmatprep.mubr.f32.mxu0 0.0
    %407 = vmatmul.mubr.f32.gmra.mxu0 %v337
    %v408 = vpop.f32.mrf.mxu0
    %v409 = vadd.f32 %v334, %v408
    %v410 = vpop.f32.mrf.mxu0
    %411 = vmatprep.mubr.f32.mxu0 0.0
    %412 = vmatmul.mubr.f32.gmra.mxu0 %v340
    %v413 = vpop.f32.mrf.mxu0
    %v414 = vadd.f32 %v334, %v413
    %v415 = vpop.f32.mrf.mxu0
    %416 = vdwg.mxu0
    %v417 = vld [vmem:[%s8] sm:$0xff]
    %v418 = vld [vmem:[%s8 + $0x8] sm:$0xff]
    %v419 = vld [vmem:[%s8 + $0x10] sm:$0xff]
    %v420 = vld [vmem:[%s8 + $0x18] sm:$0xff]
    %v421 = vld [vmem:[%s9] sm:$0x1]
    %v423 = vlaneseq
    %v424 = vshrl.u32 %v423, 7
    %v425 = vsub.s32 0, %v424
    %v426 = vrot.slane %v421, %v425
    %428 = vmatprep.subr.mxu0 0.0
    %429 = vmatpush1.msra.mxu0 0.0
    %430 = vmatprep.subr.mxu0 0.0
    %431 = vmatpush1.msra.mxu0 0.0
    %432 = vmatprep.subr.mxu0 0.0
    %433 = vmatpush1.msra.mxu0 0.0
    %434 = vmatprep.subr.mxu0 0.0
    %435 = vmatpush1.msra.mxu0 0.0
    %436 = vmatprep.subr.mxu0 0.0
    %437 = vmatpush1.msra.mxu0 0.0
    %438 = vmatprep.subr.mxu0 0.0
    %439 = vmatpush1.msra.mxu0 0.0
    %440 = vmatprep.subr.mxu0 0.0
    %441 = vmatpush1.msra.mxu0 0.0
    %442 = vmatprep.subr.mxu0 0.0
    %443 = vmatpush1.msra.mxu0 0.0
    %444 = vmatprep.subr.mxu0 0.0
    %445 = vmatpush1.msra.mxu0 0.0
    %446 = vmatprep.subr.mxu0 0.0
    %447 = vmatpush1.msra.mxu0 0.0
    %448 = vmatprep.subr.mxu0 0.0
    %449 = vmatpush1.msra.mxu0 0.0
    %450 = vmatprep.subr.mxu0 0.0
    %451 = vmatpush1.msra.mxu0 0.0
    %452 = vmatprep.subr.mxu0 0.0
    %453 = vmatpush1.msra.mxu0 %v420
    %454 = vmatprep.subr.mxu0 0.0
    %455 = vmatpush1.msra.mxu0 %v419
    %456 = vmatprep.subr.mxu0 0.0
    %457 = vmatpush1.msra.mxu0 %v418
    %458 = vmatprep.subr.mxu0 0.0
    %459 = vmatpush1.msra.mxu0 %v417
    %460 = vmatprep.subr.mxu0 0.0
    %461 = vmatpush2.msra.mxu0 0.0
    %462 = vmatprep.subr.mxu0 0.0
    %463 = vmatpush2.msra.mxu0 0.0
    %464 = vmatprep.subr.mxu0 0.0
    %465 = vmatpush2.msra.mxu0 0.0
    %466 = vmatprep.subr.mxu0 0.0
    %467 = vmatpush2.msra.mxu0 0.0
    %468 = vmatprep.subr.mxu0 0.0
    %469 = vmatpush2.msra.mxu0 0.0
    %470 = vmatprep.subr.mxu0 0.0
    %471 = vmatpush2.msra.mxu0 0.0
    %472 = vmatprep.subr.mxu0 0.0
    %473 = vmatpush2.msra.mxu0 0.0
    %474 = vmatprep.subr.mxu0 0.0
    %475 = vmatpush2.msra.mxu0 0.0
    %476 = vmatprep.subr.mxu0 0.0
    %477 = vmatpush2.msra.mxu0 0.0
    %478 = vmatprep.subr.mxu0 0.0
    %479 = vmatpush2.msra.mxu0 0.0
    %480 = vmatprep.subr.mxu0 0.0
    %481 = vmatpush2.msra.mxu0 0.0
    %482 = vmatprep.subr.mxu0 0.0
    %483 = vmatpush2.msra.mxu0 0.0
    %484 = vmatprep.subr.mxu0 0.0
    %485 = vmatpush2.msra.mxu0 0.0
    %486 = vmatprep.subr.mxu0 0.0
    %487 = vmatpush2.msra.mxu0 0.0
    %488 = vmatprep.subr.mxu0 0.0
    %489 = vmatpush2.msra.mxu0 0.0
    %490 = vmatprep.subr.mxu0 0.0
    %491 = vmatpush2.msra.mxu0 0.0
    %492 = vmatprep.mubr.f32.mxu0 0.0
    %493 = vmatmul.mubr.f32.gmra.mxu0 %v337
    %v494 = vpop.f32.mrf.mxu0
    %v495 = vadd.f32 %v426, %v494
    %v496 = vpop.f32.mrf.mxu0
    %497 = vmatprep.mubr.f32.mxu0 0.0
    %498 = vmatmul.mubr.f32.gmra.mxu0 %v340
    %v499 = vpop.f32.mrf.mxu0
    %v500 = vadd.f32 %v426, %v499
    %v501 = vpop.f32.mrf.mxu0
    %502 = vdwg.mxu0
    %v503 = vmul.f32 %v409, 1.442695
    %v504 = vpow.pop %v503
    %v505 = vmul.f32 %v414, 1.442695
    %v506 = vpow.pop %v505
    %v507 = vlaneseq
    %v508 = vshrl.u32 %v507, 7
    %v509 = vsub.s32 0, %v508
    %v510 = vrot.slane %v317, %v509
    %v511 = vlaneseq
    %v512 = vshrl.u32 %v511, 7
    %v513 = vsub.s32 0, %v512
    %v514 = vrot.slane %v324, %v513
    %v517 = vmul.f32 %v510, %v504
    %v518 = vmul.f32 %v514, %v506
    %v519 = vadd.f32 %v517, %v495
    %v520 = vadd.f32 %v518, %v500
    %v521 = vsel %vm219, %v409, 0.0
    %522 = vadd.xlane.f32.xlu0 %v521
    %v523 = vpop.xlane.xlu0 %522
    %v524 = vsel %vm219, %v414, 0.0
    %525 = vadd.xlane.f32.xlu0 %v524
    %v526 = vpop.xlane.xlu0 %525
    %v527 = vmul.f32 %v519, %v519
    %v528 = vmul.f32 %v520, %v520
    %v529 = vsel %vm219, %v527, 0.0
    %530 = vadd.xlane.f32.xlu0 %v529
    %v531 = vpop.xlane.xlu0 %530
    %v532 = vsel %vm219, %v528, 0.0
    %533 = vadd.xlane.f32.xlu0 %v532
    %v534 = vpop.xlane.xlu0 %533
    %v535 = vmul.f32 %v531, -0.5
    %v536 = vmul.f32 %v534, -0.5
    %v537 = vsub.f32 %v535, 29.406033
    %v538 = vsub.f32 %v536, 29.406033
    %v539 = vadd.f32 %v537, %v523
    %v540 = vadd.f32 %v538, %v526
    %v543 = vlaneseq
    %v544 = vand.u32 %v543, 127
    %v545 = vlaneseq
    %v546 = vshrl.u32 %v545, 7
    %v547 = vsub.s32 %v544, %v546
    %v548 = vrot.slane %v539, %v547
    %v549 = vlaneseq
    %v550 = vshrl.u32 %v549, 7
    %v551 = vsub.s32 %v544, %v550
    %v552 = vrot.slane %v540, %v551
    %vm553 = vcmask 1041409
    %v554 = vsel %vm553, %v552, %v548
    %vm556 = vcmask 58368
    %v557 = vsel %vm556, %v554, -inf
    %558 = vmax.xlane.f32.xlu0 %v557
    %v559 = vpop.xlane.xlu0 %558
    %v561 = vlaneseq
    %v562 = vshrl.u32 %v561, 7
    %v563 = vsub.s32 0, %v562
    %v564 = vrot.slane %v559, %v563
    %v565 = vlaneseq
    %v566 = vshrl.u32 %v565, 7
    %v567 = vsub.s32 1, %v566
    %v568 = vrot.slane %v559, %v567
    %v571 = vsub.f32 %v539, %v564
    %v572 = vsub.f32 %v540, %v568
    %575 = vset.pattern.permute.xlu0 0
    %576 = vperm.xlu0 %575, %v571
    %v577 = vpop.permute.xlu0 %576
    %578 = vset.pattern.permute.xlu0 0
    %579 = vperm.xlu0 %578, %v572
    %v580 = vpop.permute.xlu0 %579
    %v581 = vlaneseq
    %v582 = vshrl.u32 %v581, 7
    %v583 = vsub.s32 %v544, %v582
    %v584 = vrot.slane %v577, %v583
    %v585 = vlaneseq
    %v586 = vshrl.u32 %v585, 7
    %v587 = vsub.s32 %v544, %v586
    %v588 = vrot.slane %v580, %v587
    %v589 = vsel %vm553, %v588, %v584
    %591 = vst.msk [vmem:[#allocation13] sm:$0x3] %vm556, %v589
    // Predicated region
    $region66: #{tpu_custom_call.1} parent=1 // pred_check
      _
    $region67: #{tpu_custom_call.1} parent=1 // pred_check_branch
      %593 = sbr.rel (0) target = $region69
    $region68: #{tpu_custom_call.1} parent=1 // pred_region
      %s595 = ssub.s32 32, 32
      %596 = vsyncadd [#allocation4], %s595
      %s598 = sshll.u32 [#allocation13], 4
      %s599 = int_to_ptr.vmem [resolvable:$true] %s598
      %601 = dma.vmem_to_hbm [thread:$0]  %s599, 32, %s10, [#allocation4]
    $region69: #{tpu_custom_call.1} parent=1 // pred_fallthru
      _
    // Predicated region
    $region70: #{tpu_custom_call.1} parent=1 // pred_check
      _
    $region71: #{tpu_custom_call.1} parent=1 // pred_check_branch
      %603 = sbr.rel (0) target = $region73
    $region72: #{tpu_custom_call.1} parent=1 // pred_region
      %604 = dma.done [#allocation4], 32
    $region73: #{tpu_custom_call.1} parent=1 // pred_fallthru
      _
    %605 = vsyncpa [#allocation3], 1
    %606 = vsyncpa [#allocation6], 1
    %607 = vsyncpa [#allocation9], 1
    %608 = vsyncpa [#allocation12], 1
    %609 = vsyncpa [#allocation4], 1

// kernel: tpu_custom_call.1
$region0: #{tpu_custom_call.1}
  #allocation0 [shape = 'u32[]', space=smem, size = 0x4, offset = 0x4, fixed_abs, tag = 'smem constant byte address 0x4 - core index']
  #allocation1 [shape = 'u32[144,128]{1,0:T(1,128)}', space=vmem, size = 0x12000, scoped, tag = 'internal scratch']
  %s0 = inlined_call_operand.vmem [shape: f32[2,32], index: 0, kind: input, shape index: {}]
  %s1 = inlined_call_operand.vmem [shape: f32[16,4], index: 1, kind: input, shape index: {}]
  %s2 = inlined_call_operand.hbm [shape: f32[4,32], index: 2, kind: input, shape index: {}]
  %s3 = inlined_call_operand.hbm [shape: f32[1,32], index: 3, kind: input, shape index: {}]
  %s4 = inlined_call_operand.hbm [shape: f32[32,32], index: 4, kind: input, shape index: {}]
  %s5 = inlined_call_operand.hbm [shape: f32[1,32], index: 5, kind: input, shape index: {}]
  %s6 = inlined_call_operand.hbm [shape: f32[32,32], index: 6, kind: input, shape index: {}]
  %s7 = inlined_call_operand.hbm [shape: f32[1,32], index: 7, kind: input, shape index: {}]
  %s8 = inlined_call_operand.vmem [shape: f32[32,32], index: 8, kind: input, shape index: {}]
  %s9 = inlined_call_operand.vmem [shape: f32[1,32], index: 9, kind: input, shape index: {}]
  %s10 = inlined_call_operand.hbm [shape: f32[2,8], index: 10, kind: output, shape index: {}]
  %s11 = sld [smem:[#allocation0]]
  $region74: #{tpu_custom_call.1} parent=0
    _
  %s13 = ssub.s32 1, %s11
  %s14 = scalar_select 0, %s13, %s11
  $region1: #{tpu_custom_call.1} parent=0
    #allocation2 [shape = 'u8[2048]{0}', space=vmem, size = 0x800, scoped, tag = 'input window, operand 2, single buffered']
    #allocation3 [shape = 's32[1]{0}', space=sflag, size = 0x4, scoped, tag = 'scoped memory for tpu_custom_call.1']
    #allocation4 [shape = 's32[1]{0}', space=sflag, size = 0x4, scoped, tag = 'scoped memory for tpu_custom_call.1']
    #allocation5 [shape = 'u8[512]{0}', space=vmem, size = 0x400, scoped, tag = 'input window, operand 3, single buffered']
    #allocation6 [shape = 's32[1]{0}', space=sflag, size = 0x4, scoped, tag = 'scoped memory for tpu_custom_call.1']
    #allocation7 [shape = 'u8[16384]{0}', space=vmem, size = 0x4000, scoped, tag = 'input window, operand 4, single buffered']
    #allocation8 [shape = 'u8[512]{0}', space=vmem, size = 0x400, scoped, tag = 'input window, operand 5, single buffered']
    #allocation9 [shape = 's32[1]{0}', space=sflag, size = 0x4, scoped, tag = 'scoped memory for tpu_custom_call.1']
    #allocation10 [shape = 'u8[16384]{0}', space=vmem, size = 0x4000, scoped, tag = 'input window, operand 6, single buffered']
    #allocation11 [shape = 'u8[512]{0}', space=vmem, size = 0x400, scoped, tag = 'input window, operand 7, single buffered']
    #allocation12 [shape = 's32[1]{0}', space=sflag, size = 0x4, scoped, tag = 'scoped memory for tpu_custom_call.1']
    #allocation13 [shape = 'u8[1024]{0}', space=vmem, size = 0x400, scoped, tag = 'output window, operand 0, single buffered']
    %15 = vsyncpa [#allocation3], 0
    %16 = vsyncpa [#allocation6], 0
    %17 = vsyncpa [#allocation9], 0
    %18 = vsyncpa [#allocation12], 0
    %19 = vsyncpa [#allocation4], 0
    // Predicated region
    $region2: #{tpu_custom_call.1} parent=1 // pred_check
      _
    $region3: #{tpu_custom_call.1} parent=1 // pred_check_branch
      %21 = sbr.rel (0) target = $region5
    $region4: #{tpu_custom_call.1} parent=1 // pred_region
      _
    $region5: #{tpu_custom_call.1} parent=1 // pred_fallthru
      _
    // Predicated region
    $region6: #{tpu_custom_call.1} parent=1 // pred_check
      _
    $region7: #{tpu_custom_call.1} parent=1 // pred_check_branch
      %23 = sbr.rel (0) target = $region9
    $region8: #{tpu_custom_call.1} parent=1 // pred_region
      _
    $region9: #{tpu_custom_call.1} parent=1 // pred_fallthru
      _
    // Predicated region
    $region10: #{tpu_custom_call.1} parent=1 // pred_check
      _
    $region11: #{tpu_custom_call.1} parent=1 // pred_check_branch
      %25 = sbr.rel (0) target = $region13
    $region12: #{tpu_custom_call.1} parent=1 // pred_region
      %s27 = ssub.s32 64, 64
      %28 = vsyncadd [#allocation3], %s27
      %s30 = sshll.u32 [#allocation2], 4
      %s31 = int_to_ptr.vmem [resolvable:$true] %s30
      %33 = dma.hbm_to_vmem [thread:$0]  %s2, 64, %s31, [#allocation3]
    $region13: #{tpu_custom_call.1} parent=1 // pred_fallthru
      _
    // Predicated region
    $region14: #{tpu_custom_call.1} parent=1 // pred_check
      _
    $region15: #{tpu_custom_call.1} parent=1 // pred_check_branch
      %35 = sbr.rel (0) target = $region17
    $region16: #{tpu_custom_call.1} parent=1 // pred_region
      %s37 = ssub.s32 16, 16
      %38 = vsyncadd [#allocation6], %s37
      %s40 = sshll.u32 [#allocation5], 4
      %s41 = int_to_ptr.vmem [resolvable:$true] %s40
      %43 = dma.hbm_to_vmem [thread:$0]  %s3, 16, %s41, [#allocation6]
    $region17: #{tpu_custom_call.1} parent=1 // pred_fallthru
      _
    // Predicated region
    $region18: #{tpu_custom_call.1} parent=1 // pred_check
      _
    $region19: #{tpu_custom_call.1} parent=1 // pred_check_branch
      %45 = sbr.rel (0) target = $region21
    $region20: #{tpu_custom_call.1} parent=1 // pred_region
      %s47 = ssub.s32 512, 512
      %48 = vsyncadd [#allocation6], %s47
      %s49 = sshll.u32 [#allocation7], 4
      %s50 = int_to_ptr.vmem [resolvable:$true] %s49
      %55 = dma.hbm_to_vmem [thread:$0]  %s4, 512, %s50, [#allocation6], 128, 128, 8
    $region21: #{tpu_custom_call.1} parent=1 // pred_fallthru
      _
    // Predicated region
    $region22: #{tpu_custom_call.1} parent=1 // pred_check
      _
    $region23: #{tpu_custom_call.1} parent=1 // pred_check_branch
      %57 = sbr.rel (0) target = $region25
    $region24: #{tpu_custom_call.1} parent=1 // pred_region
      %s59 = ssub.s32 16, 16
      %60 = vsyncadd [#allocation9], %s59
      %s62 = sshll.u32 [#allocation8], 4
      %s63 = int_to_ptr.vmem [resolvable:$true] %s62
      %65 = dma.hbm_to_vmem [thread:$0]  %s5, 16, %s63, [#allocation9]
    $region25: #{tpu_custom_call.1} parent=1 // pred_fallthru
      _
    // Predicated region
    $region26: #{tpu_custom_call.1} parent=1 // pred_check
      _
    $region27: #{tpu_custom_call.1} parent=1 // pred_check_branch
      %67 = sbr.rel (0) target = $region29
    $region28: #{tpu_custom_call.1} parent=1 // pred_region
      %s69 = ssub.s32 512, 512
      %70 = vsyncadd [#allocation9], %s69
      %s71 = sshll.u32 [#allocation10], 4
      %s72 = int_to_ptr.vmem [resolvable:$true] %s71
      %77 = dma.hbm_to_vmem [thread:$0]  %s6, 512, %s72, [#allocation9], 128, 128, 8
    $region29: #{tpu_custom_call.1} parent=1 // pred_fallthru
      _
    // Predicated region
    $region30: #{tpu_custom_call.1} parent=1 // pred_check
      _
    $region31: #{tpu_custom_call.1} parent=1 // pred_check_branch
      %79 = sbr.rel (0) target = $region33
    $region32: #{tpu_custom_call.1} parent=1 // pred_region
      %s81 = ssub.s32 16, 16
      %82 = vsyncadd [#allocation12], %s81
      %s84 = sshll.u32 [#allocation11], 4
      %s85 = int_to_ptr.vmem [resolvable:$true] %s84
      %87 = dma.hbm_to_vmem [thread:$0]  %s7, 16, %s85, [#allocation12]
    $region33: #{tpu_custom_call.1} parent=1 // pred_fallthru
      _
    // Predicated region
    $region34: #{tpu_custom_call.1} parent=1 // pred_check
      _
    $region35: #{tpu_custom_call.1} parent=1 // pred_check_branch
      %89 = sbr.rel (0) target = $region37
    $region36: #{tpu_custom_call.1} parent=1 // pred_region
      _
    $region37: #{tpu_custom_call.1} parent=1 // pred_fallthru
      _
    // Predicated region
    $region38: #{tpu_custom_call.1} parent=1 // pred_check
      _
    $region39: #{tpu_custom_call.1} parent=1 // pred_check_branch
      %91 = sbr.rel (0) target = $region41
    $region40: #{tpu_custom_call.1} parent=1 // pred_region
      _
    $region41: #{tpu_custom_call.1} parent=1 // pred_fallthru
      _
    // Predicated region
    $region42: #{tpu_custom_call.1} parent=1 // pred_check
      _
    $region43: #{tpu_custom_call.1} parent=1 // pred_check_branch
      %93 = sbr.rel (0) target = $region45
    $region44: #{tpu_custom_call.1} parent=1 // pred_region
      %94 = dma.done [#allocation3], 64
    $region45: #{tpu_custom_call.1} parent=1 // pred_fallthru
      _
    // Predicated region
    $region46: #{tpu_custom_call.1} parent=1 // pred_check
      _
    $region47: #{tpu_custom_call.1} parent=1 // pred_check_branch
      %96 = sbr.rel (0) target = $region49
    $region48: #{tpu_custom_call.1} parent=1 // pred_region
      %97 = dma.done [#allocation6], 16
    $region49: #{tpu_custom_call.1} parent=1 // pred_fallthru
      _
    // Predicated region
    $region50: #{tpu_custom_call.1} parent=1 // pred_check
      _
    $region51: #{tpu_custom_call.1} parent=1 // pred_check_branch
      %99 = sbr.rel (0) target = $region53
    $region52: #{tpu_custom_call.1} parent=1 // pred_region
      %100 = dma.done [#allocation6], 512
    $region53: #{tpu_custom_call.1} parent=1 // pred_fallthru
      _
    // Predicated region
    $region54: #{tpu_custom_call.1} parent=1 // pred_check
      _
    $region55: #{tpu_custom_call.1} parent=1 // pred_check_branch
      %102 = sbr.rel (0) target = $region57
    $region56: #{tpu_custom_call.1} parent=1 // pred_region
      %103 = dma.done [#allocation9], 16
    $region57: #{tpu_custom_call.1} parent=1 // pred_fallthru
      _
    // Predicated region
    $region58: #{tpu_custom_call.1} parent=1 // pred_check
      _
    $region59: #{tpu_custom_call.1} parent=1 // pred_check_branch
      %105 = sbr.rel (0) target = $region61
    $region60: #{tpu_custom_call.1} parent=1 // pred_region
      %106 = dma.done [#allocation9], 512
    $region61: #{tpu_custom_call.1} parent=1 // pred_fallthru
      _
    // Predicated region
    $region62: #{tpu_custom_call.1} parent=1 // pred_check
      _
    $region63: #{tpu_custom_call.1} parent=1 // pred_check_branch
      %108 = sbr.rel (0) target = $region65
    $region64: #{tpu_custom_call.1} parent=1 // pred_region
      %109 = dma.done [#allocation12], 16
    $region65: #{tpu_custom_call.1} parent=1 // pred_fallthru
      _
    %v110 = vld [vmem:[%s1] sm:$0xff]
    %v111 = vld [vmem:[%s1 + $0x8] sm:$0xff]
    %v112 = vld [vmem:[#allocation2] sm:$0xf]
    %v113 = vld [vmem:[#allocation5] sm:$0x1]
    %v115 = vlaneseq
    %v116 = vshrl.u32 %v115, 7
    %v117 = vsub.s32 0, %v116
    %v118 = vrot.slane %v113, %v117
    %vm120 = vcmask 31744
    %v122 = vsel %vm120, %v110, 0
    %v125 = vsel %vm120, %v111, 0
    %vm127 = vcmask 1043456
    %v129 = vsel %vm127, %v112, 0
    %131 = vmatprep.subr.mxu0 0.0
    %132 = vmatpush1.msra.mxu0 0.0
    %133 = vmatprep.subr.mxu0 0.0
    %134 = vmatpush1.msra.mxu0 0.0
    %135 = vmatprep.subr.mxu0 0.0
    %136 = vmatpush1.msra.mxu0 0.0
    %137 = vmatprep.subr.mxu0 0.0
    %138 = vmatpush1.msra.mxu0 0.0
    %139 = vmatprep.subr.mxu0 0.0
    %140 = vmatpush1.msra.mxu0 0.0
    %141 = vmatprep.subr.mxu0 0.0
    %142 = vmatpush1.msra.mxu0 0.0
    %143 = vmatprep.subr.mxu0 0.0
    %144 = vmatpush1.msra.mxu0 0.0
    %145 = vmatprep.subr.mxu0 0.0
    %146 = vmatpush1.msra.mxu0 0.0
    %147 = vmatprep.subr.mxu0 0.0
    %148 = vmatpush1.msra.mxu0 0.0
    %149 = vmatprep.subr.mxu0 0.0
    %150 = vmatpush1.msra.mxu0 0.0
    %151 = vmatprep.subr.mxu0 0.0
    %152 = vmatpush1.msra.mxu0 0.0
    %153 = vmatprep.subr.mxu0 0.0
    %154 = vmatpush1.msra.mxu0 0.0
    %155 = vmatprep.subr.mxu0 0.0
    %156 = vmatpush1.msra.mxu0 0.0
    %157 = vmatprep.subr.mxu0 0.0
    %158 = vmatpush1.msra.mxu0 0.0
    %159 = vmatprep.subr.mxu0 0.0
    %160 = vmatpush1.msra.mxu0 0.0
    %161 = vmatprep.subr.mxu0 0.0
    %162 = vmatpush1.msra.mxu0 %v129
    %163 = vmatprep.subr.mxu0 0.0
    %164 = vmatpush2.msra.mxu0 0.0
    %165 = vmatprep.subr.mxu0 0.0
    %166 = vmatpush2.msra.mxu0 0.0
    %167 = vmatprep.subr.mxu0 0.0
    %168 = vmatpush2.msra.mxu0 0.0
    %169 = vmatprep.subr.mxu0 0.0
    %170 = vmatpush2.msra.mxu0 0.0
    %171 = vmatprep.subr.mxu0 0.0
    %172 = vmatpush2.msra.mxu0 0.0
    %173 = vmatprep.subr.mxu0 0.0
    %174 = vmatpush2.msra.mxu0 0.0
    %175 = vmatprep.subr.mxu0 0.0
    %176 = vmatpush2.msra.mxu0 0.0
    %177 = vmatprep.subr.mxu0 0.0
    %178 = vmatpush2.msra.mxu0 0.0
    %179 = vmatprep.subr.mxu0 0.0
    %180 = vmatpush2.msra.mxu0 0.0
    %181 = vmatprep.subr.mxu0 0.0
    %182 = vmatpush2.msra.mxu0 0.0
    %183 = vmatprep.subr.mxu0 0.0
    %184 = vmatpush2.msra.mxu0 0.0
    %185 = vmatprep.subr.mxu0 0.0
    %186 = vmatpush2.msra.mxu0 0.0
    %187 = vmatprep.subr.mxu0 0.0
    %188 = vmatpush2.msra.mxu0 0.0
    %189 = vmatprep.subr.mxu0 0.0
    %190 = vmatpush2.msra.mxu0 0.0
    %191 = vmatprep.subr.mxu0 0.0
    %192 = vmatpush2.msra.mxu0 0.0
    %193 = vmatprep.subr.mxu0 0.0
    %194 = vmatpush2.msra.mxu0 0.0
    %195 = vmatprep.mubr.f32.mxu0 0.0
    %196 = vmatmul.mubr.f32.gmra.mxu0 %v122
    %v197 = vpop.f32.mrf.mxu0
    %v198 = vadd.f32 %v118, %v197
    %v199 = vpop.f32.mrf.mxu0
    %200 = vmatprep.mubr.f32.mxu0 0.0
    %201 = vmatmul.mubr.f32.gmra.mxu0 %v125
    %v202 = vpop.f32.mrf.mxu0
    %v203 = vadd.f32 %v118, %v202
    %v204 = vpop.f32.mrf.mxu0
    %205 = vdwg.mxu0
    %v206 = vmax.f32 %v198, 0.0
    %v207 = vmax.f32 %v203, 0.0
    %v208 = vld [vmem:[#allocation7] sm:$0xff]
    %v209 = vld [vmem:[#allocation7 + $0x8] sm:$0xff]
    %v210 = vld [vmem:[#allocation7 + $0x10] sm:$0xff]
    %v211 = vld [vmem:[#allocation7 + $0x18] sm:$0xff]
    %v212 = vld [vmem:[#allocation8] sm:$0x1]
    %v214 = vlaneseq
    %v215 = vshrl.u32 %v214, 7
    %v216 = vsub.s32 0, %v215
    %v217 = vrot.slane %v212, %v216
    %vm219 = vcmask 261120
    %v221 = vsel %vm219, %v206, 0
    %v224 = vsel %vm219, %v207, 0
    %226 = vmatprep.subr.mxu0 0.0
    %227 = vmatpush1.msra.mxu0 0.0
    %228 = vmatprep.subr.mxu0 0.0
    %229 = vmatpush1.msra.mxu0 0.0
    %230 = vmatprep.subr.mxu0 0.0
    %231 = vmatpush1.msra.mxu0 0.0
    %232 = vmatprep.subr.mxu0 0.0
    %233 = vmatpush1.msra.mxu0 0.0
    %234 = vmatprep.subr.mxu0 0.0
    %235 = vmatpush1.msra.mxu0 0.0
    %236 = vmatprep.subr.mxu0 0.0
    %237 = vmatpush1.msra.mxu0 0.0
    %238 = vmatprep.subr.mxu0 0.0
    %239 = vmatpush1.msra.mxu0 0.0
    %240 = vmatprep.subr.mxu0 0.0
    %241 = vmatpush1.msra.mxu0 0.0
    %242 = vmatprep.subr.mxu0 0.0
    %243 = vmatpush1.msra.mxu0 0.0
    %244 = vmatprep.subr.mxu0 0.0
    %245 = vmatpush1.msra.mxu0 0.0
    %246 = vmatprep.subr.mxu0 0.0
    %247 = vmatpush1.msra.mxu0 0.0
    %248 = vmatprep.subr.mxu0 0.0
    %249 = vmatpush1.msra.mxu0 0.0
    %250 = vmatprep.subr.mxu0 0.0
    %251 = vmatpush1.msra.mxu0 %v211
    %252 = vmatprep.subr.mxu0 0.0
    %253 = vmatpush1.msra.mxu0 %v210
    %254 = vmatprep.subr.mxu0 0.0
    %255 = vmatpush1.msra.mxu0 %v209
    %256 = vmatprep.subr.mxu0 0.0
    %257 = vmatpush1.msra.mxu0 %v208
    %258 = vmatprep.subr.mxu0 0.0
    %259 = vmatpush2.msra.mxu0 0.0
    %260 = vmatprep.subr.mxu0 0.0
    %261 = vmatpush2.msra.mxu0 0.0
    %262 = vmatprep.subr.mxu0 0.0
    %263 = vmatpush2.msra.mxu0 0.0
    %264 = vmatprep.subr.mxu0 0.0
    %265 = vmatpush2.msra.mxu0 0.0
    %266 = vmatprep.subr.mxu0 0.0
    %267 = vmatpush2.msra.mxu0 0.0
    %268 = vmatprep.subr.mxu0 0.0
    %269 = vmatpush2.msra.mxu0 0.0
    %270 = vmatprep.subr.mxu0 0.0
    %271 = vmatpush2.msra.mxu0 0.0
    %272 = vmatprep.subr.mxu0 0.0
    %273 = vmatpush2.msra.mxu0 0.0
    %274 = vmatprep.subr.mxu0 0.0
    %275 = vmatpush2.msra.mxu0 0.0
    %276 = vmatprep.subr.mxu0 0.0
    %277 = vmatpush2.msra.mxu0 0.0
    %278 = vmatprep.subr.mxu0 0.0
    %279 = vmatpush2.msra.mxu0 0.0
    %280 = vmatprep.subr.mxu0 0.0
    %281 = vmatpush2.msra.mxu0 0.0
    %282 = vmatprep.subr.mxu0 0.0
    %283 = vmatpush2.msra.mxu0 0.0
    %284 = vmatprep.subr.mxu0 0.0
    %285 = vmatpush2.msra.mxu0 0.0
    %286 = vmatprep.subr.mxu0 0.0
    %287 = vmatpush2.msra.mxu0 0.0
    %288 = vmatprep.subr.mxu0 0.0
    %289 = vmatpush2.msra.mxu0 0.0
    %290 = vmatprep.mubr.f32.mxu0 0.0
    %291 = vmatmul.mubr.f32.gmra.mxu0 %v221
    %v292 = vpop.f32.mrf.mxu0
    %v293 = vadd.f32 %v217, %v292
    %v294 = vpop.f32.mrf.mxu0
    %295 = vmatprep.mubr.f32.mxu0 0.0
    %296 = vmatmul.mubr.f32.gmra.mxu0 %v224
    %v297 = vpop.f32.mrf.mxu0
    %v298 = vadd.f32 %v217, %v297
    %v299 = vpop.f32.mrf.mxu0
    %300 = vdwg.mxu0
    %v301 = vld [vmem:[%s0] sm:$0x3]
    %v304 = vunpack.c.l.s4 1966171168
    %v305 = vunpack.c.0.s8 %v304
    %v306 = vlaneseq
    %v307 = vshrl.u32 %v306, 7
    %v308 = vsub.s32 %v305, %v307
    %v309 = vrot.slane %v301, %v308
    %v310 = vcombine.high %v309, %v309
    %v312 = vunpack.c.l.s4 1966171168
    %v313 = vunpack.c.0.s8 %v312
    %v314 = vlaneseq
    %v315 = vshrl.u32 %v314, 7
    %v316 = vsub.s32 %v313, %v315
    %v317 = vrot.slane %v309, %v316
    %v319 = vunpack.c.l.s4 1966171168
    %v320 = vunpack.c.0.s8 %v319
    %v321 = vlaneseq
    %v322 = vshrl.u32 %v321, 7
    %v323 = vsub.s32 %v320, %v322
    %v324 = vrot.slane %v310, %v323
    %v325 = vld [vmem:[#allocation10] sm:$0xff]
    %v326 = vld [vmem:[#allocation10 + $0x8] sm:$0xff]
    %v327 = vld [vmem:[#allocation10 + $0x10] sm:$0xff]
    %v328 = vld [vmem:[#allocation10 + $0x18] sm:$0xff]
    %v329 = vld [vmem:[#allocation11] sm:$0x1]
    %v331 = vlaneseq
    %v332 = vshrl.u32 %v331, 7
    %v333 = vsub.s32 0, %v332
    %v334 = vrot.slane %v329, %v333
    %v337 = vsel %vm219, %v293, 0
    %v340 = vsel %vm219, %v298, 0
    %342 = vmatprep.subr.mxu0 0.0
    %343 = vmatpush1.msra.mxu0 0.0
    %344 = vmatprep.subr.mxu0 0.0
    %345 = vmatpush1.msra.mxu0 0.0
    %346 = vmatprep.subr.mxu0 0.0
    %347 = vmatpush1.msra.mxu0 0.0
    %348 = vmatprep.subr.mxu0 0.0
    %349 = vmatpush1.msra.mxu0 0.0
    %350 = vmatprep.subr.mxu0 0.0
    %351 = vmatpush1.msra.mxu0 0.0
    %352 = vmatprep.subr.mxu0 0.0
    %353 = vmatpush1.msra.mxu0 0.0
    %354 = vmatprep.subr.mxu0 0.0
    %355 = vmatpush1.msra.mxu0 0.0
    %356 = vmatprep.subr.mxu0 0.0
    %357 = vmatpush1.msra.mxu0 0.0
    %358 = vmatprep.subr.mxu0 0.0
    %359 = vmatpush1.msra.mxu0 0.0
    %360 = vmatprep.subr.mxu0 0.0
    %361 = vmatpush1.msra.mxu0 0.0
    %362 = vmatprep.subr.mxu0 0.0
    %363 = vmatpush1.msra.mxu0 0.0
    %364 = vmatprep.subr.mxu0 0.0
    %365 = vmatpush1.msra.mxu0 0.0
    %366 = vmatprep.subr.mxu0 0.0
    %367 = vmatpush1.msra.mxu0 %v328
    %368 = vmatprep.subr.mxu0 0.0
    %369 = vmatpush1.msra.mxu0 %v327
    %370 = vmatprep.subr.mxu0 0.0
    %371 = vmatpush1.msra.mxu0 %v326
    %372 = vmatprep.subr.mxu0 0.0
    %373 = vmatpush1.msra.mxu0 %v325
    %374 = vmatprep.subr.mxu0 0.0
    %375 = vmatpush2.msra.mxu0 0.0
    %376 = vmatprep.subr.mxu0 0.0
    %377 = vmatpush2.msra.mxu0 0.0
    %378 = vmatprep.subr.mxu0 0.0
    %379 = vmatpush2.msra.mxu0 0.0
    %380 = vmatprep.subr.mxu0 0.0
    %381 = vmatpush2.msra.mxu0 0.0
    %382 = vmatprep.subr.mxu0 0.0
    %383 = vmatpush2.msra.mxu0 0.0
    %384 = vmatprep.subr.mxu0 0.0
    %385 = vmatpush2.msra.mxu0 0.0
    %386 = vmatprep.subr.mxu0 0.0
    %387 = vmatpush2.msra.mxu0 0.0
    %388 = vmatprep.subr.mxu0 0.0
    %389 = vmatpush2.msra.mxu0 0.0
    %390 = vmatprep.subr.mxu0 0.0
    %391 = vmatpush2.msra.mxu0 0.0
    %392 = vmatprep.subr.mxu0 0.0
    %393 = vmatpush2.msra.mxu0 0.0
    %394 = vmatprep.subr.mxu0 0.0
    %395 = vmatpush2.msra.mxu0 0.0
    %396 = vmatprep.subr.mxu0 0.0
    %397 = vmatpush2.msra.mxu0 0.0
    %398 = vmatprep.subr.mxu0 0.0
    %399 = vmatpush2.msra.mxu0 0.0
    %400 = vmatprep.subr.mxu0 0.0
    %401 = vmatpush2.msra.mxu0 0.0
    %402 = vmatprep.subr.mxu0 0.0
    %403 = vmatpush2.msra.mxu0 0.0
    %404 = vmatprep.subr.mxu0 0.0
    %405 = vmatpush2.msra.mxu0 0.0
    %406 = vmatprep.mubr.f32.mxu0 0.0
    %407 = vmatmul.mubr.f32.gmra.mxu0 %v337
    %v408 = vpop.f32.mrf.mxu0
    %v409 = vadd.f32 %v334, %v408
    %v410 = vpop.f32.mrf.mxu0
    %411 = vmatprep.mubr.f32.mxu0 0.0
    %412 = vmatmul.mubr.f32.gmra.mxu0 %v340
    %v413 = vpop.f32.mrf.mxu0
    %v414 = vadd.f32 %v334, %v413
    %v415 = vpop.f32.mrf.mxu0
    %416 = vdwg.mxu0
    %v417 = vld [vmem:[%s8] sm:$0xff]
    %v418 = vld [vmem:[%s8 + $0x8] sm:$0xff]
    %v419 = vld [vmem:[%s8 + $0x10] sm:$0xff]
    %v420 = vld [vmem:[%s8 + $0x18] sm:$0xff]
    %v421 = vld [vmem:[%s9] sm:$0x1]
    %v423 = vlaneseq
    %v424 = vshrl.u32 %v423, 7
    %v425 = vsub.s32 0, %v424
    %v426 = vrot.slane %v421, %v425
    %428 = vmatprep.subr.mxu0 0.0
    %429 = vmatpush1.msra.mxu0 0.0
    %430 = vmatprep.subr.mxu0 0.0
    %431 = vmatpush1.msra.mxu0 0.0
    %432 = vmatprep.subr.mxu0 0.0
    %433 = vmatpush1.msra.mxu0 0.0
    %434 = vmatprep.subr.mxu0 0.0
    %435 = vmatpush1.msra.mxu0 0.0
    %436 = vmatprep.subr.mxu0 0.0
    %437 = vmatpush1.msra.mxu0 0.0
    %438 = vmatprep.subr.mxu0 0.0
    %439 = vmatpush1.msra.mxu0 0.0
    %440 = vmatprep.subr.mxu0 0.0
    %441 = vmatpush1.msra.mxu0 0.0
    %442 = vmatprep.subr.mxu0 0.0
    %443 = vmatpush1.msra.mxu0 0.0
    %444 = vmatprep.subr.mxu0 0.0
    %445 = vmatpush1.msra.mxu0 0.0
    %446 = vmatprep.subr.mxu0 0.0
    %447 = vmatpush1.msra.mxu0 0.0
    %448 = vmatprep.subr.mxu0 0.0
    %449 = vmatpush1.msra.mxu0 0.0
    %450 = vmatprep.subr.mxu0 0.0
    %451 = vmatpush1.msra.mxu0 0.0
    %452 = vmatprep.subr.mxu0 0.0
    %453 = vmatpush1.msra.mxu0 %v420
    %454 = vmatprep.subr.mxu0 0.0
    %455 = vmatpush1.msra.mxu0 %v419
    %456 = vmatprep.subr.mxu0 0.0
    %457 = vmatpush1.msra.mxu0 %v418
    %458 = vmatprep.subr.mxu0 0.0
    %459 = vmatpush1.msra.mxu0 %v417
    %460 = vmatprep.subr.mxu0 0.0
    %461 = vmatpush2.msra.mxu0 0.0
    %462 = vmatprep.subr.mxu0 0.0
    %463 = vmatpush2.msra.mxu0 0.0
    %464 = vmatprep.subr.mxu0 0.0
    %465 = vmatpush2.msra.mxu0 0.0
    %466 = vmatprep.subr.mxu0 0.0
    %467 = vmatpush2.msra.mxu0 0.0
    %468 = vmatprep.subr.mxu0 0.0
    %469 = vmatpush2.msra.mxu0 0.0
    %470 = vmatprep.subr.mxu0 0.0
    %471 = vmatpush2.msra.mxu0 0.0
    %472 = vmatprep.subr.mxu0 0.0
    %473 = vmatpush2.msra.mxu0 0.0
    %474 = vmatprep.subr.mxu0 0.0
    %475 = vmatpush2.msra.mxu0 0.0
    %476 = vmatprep.subr.mxu0 0.0
    %477 = vmatpush2.msra.mxu0 0.0
    %478 = vmatprep.subr.mxu0 0.0
    %479 = vmatpush2.msra.mxu0 0.0
    %480 = vmatprep.subr.mxu0 0.0
    %481 = vmatpush2.msra.mxu0 0.0
    %482 = vmatprep.subr.mxu0 0.0
    %483 = vmatpush2.msra.mxu0 0.0
    %484 = vmatprep.subr.mxu0 0.0
    %485 = vmatpush2.msra.mxu0 0.0
    %486 = vmatprep.subr.mxu0 0.0
    %487 = vmatpush2.msra.mxu0 0.0
    %488 = vmatprep.subr.mxu0 0.0
    %489 = vmatpush2.msra.mxu0 0.0
    %490 = vmatprep.subr.mxu0 0.0
    %491 = vmatpush2.msra.mxu0 0.0
    %492 = vmatprep.mubr.f32.mxu0 0.0
    %493 = vmatmul.mubr.f32.gmra.mxu0 %v337
    %v494 = vpop.f32.mrf.mxu0
    %v495 = vadd.f32 %v426, %v494
    %v496 = vpop.f32.mrf.mxu0
    %497 = vmatprep.mubr.f32.mxu0 0.0
    %498 = vmatmul.mubr.f32.gmra.mxu0 %v340
    %v499 = vpop.f32.mrf.mxu0
    %v500 = vadd.f32 %v426, %v499
    %v501 = vpop.f32.mrf.mxu0
    %502 = vdwg.mxu0
    %v503 = vmul.f32 %v409, 1.442695
    %v504 = vpow.pop %v503
    %v505 = vmul.f32 %v414, 1.442695
    %v506 = vpow.pop %v505
    %v507 = vlaneseq
    %v508 = vshrl.u32 %v507, 7
    %v509 = vsub.s32 0, %v508
    %v510 = vrot.slane %v317, %v509
    %v511 = vlaneseq
    %v512 = vshrl.u32 %v511, 7
    %v513 = vsub.s32 0, %v512
    %v514 = vrot.slane %v324, %v513
    %v517 = vmul.f32 %v510, %v504
    %v518 = vmul.f32 %v514, %v506
    %v519 = vadd.f32 %v517, %v495
    %v520 = vadd.f32 %v518, %v500
    %v521 = vsel %vm219, %v409, 0.0
    %522 = vadd.xlane.f32.xlu0 %v521
    %v523 = vpop.xlane.xlu0 %522
    %v524 = vsel %vm219, %v414, 0.0
    %525 = vadd.xlane.f32.xlu0 %v524
    %v526 = vpop.xlane.xlu0 %525
    %v527 = vmul.f32 %v519, %v519
    %v528 = vmul.f32 %v520, %v520
    %v529 = vsel %vm219, %v527, 0.0
    %530 = vadd.xlane.f32.xlu0 %v529
    %v531 = vpop.xlane.xlu0 %530
    %v532 = vsel %vm219, %v528, 0.0
    %533 = vadd.xlane.f32.xlu0 %v532
    %v534 = vpop.xlane.xlu0 %533
    %v535 = vmul.f32 %v531, -0.5
    %v536 = vmul.f32 %v534, -0.5
    %v537 = vsub.f32 %v535, 29.406033
    %v538 = vsub.f32 %v536, 29.406033
    %v539 = vadd.f32 %v537, %v523
    %v540 = vadd.f32 %v538, %v526
    %v543 = vlaneseq
    %v544 = vand.u32 %v543, 127
    %v545 = vlaneseq
    %v546 = vshrl.u32 %v545, 7
    %v547 = vsub.s32 %v544, %v546
    %v548 = vrot.slane %v539, %v547
    %v549 = vlaneseq
    %v550 = vshrl.u32 %v549, 7
    %v551 = vsub.s32 %v544, %v550
    %v552 = vrot.slane %v540, %v551
    %vm553 = vcmask 1041409
    %v554 = vsel %vm553, %v552, %v548
    %vm556 = vcmask 58368
    %v557 = vsel %vm556, %v554, -inf
    %558 = vmax.xlane.f32.xlu0 %v557
    %v559 = vpop.xlane.xlu0 %558
    %v561 = vlaneseq
    %v562 = vshrl.u32 %v561, 7
    %v563 = vsub.s32 0, %v562
    %v564 = vrot.slane %v559, %v563
    %v565 = vlaneseq
    %v566 = vshrl.u32 %v565, 7
    %v567 = vsub.s32 1, %v566
    %v568 = vrot.slane %v559, %v567
    %v571 = vsub.f32 %v539, %v564
    %v572 = vsub.f32 %v540, %v568
    %575 = vset.pattern.permute.xlu0 0
    %576 = vperm.xlu0 %575, %v571
    %v577 = vpop.permute.xlu0 %576
    %578 = vset.pattern.permute.xlu0 0
    %579 = vperm.xlu0 %578, %v572
    %v580 = vpop.permute.xlu0 %579
    %v581 = vlaneseq
    %v582 = vshrl.u32 %v581, 7
    %v583 = vsub.s32 %v544, %v582
    %v584 = vrot.slane %v577, %v583
    %v585 = vlaneseq
    %v586 = vshrl.u32 %v585, 7
    %v587 = vsub.s32 %v544, %v586
    %v588 = vrot.slane %v580, %v587
    %v589 = vsel %vm553, %v588, %v584
    %591 = vst.msk [vmem:[#allocation13] sm:$0x3] %vm556, %v589
    // Predicated region
    $region66: #{tpu_custom_call.1} parent=1 // pred_check
      _
    $region67: #{tpu_custom_call.1} parent=1 // pred_check_branch
      %593 = sbr.rel (0) target = $region69
    $region68: #{tpu_custom_call.1} parent=1 // pred_region
      %s595 = ssub.s32 32, 32
      %596 = vsyncadd [#allocation4], %s595
      %s598 = sshll.u32 [#allocation13], 4
      %s599 = int_to_ptr.vmem [resolvable:$true] %s598
      %601 = dma.vmem_to_hbm [thread:$0]  %s599, 32, %s10, [#allocation4]
    $region69: #{tpu_custom_call.1} parent=1 // pred_fallthru
      _
    // Predicated region
    $region70: #{tpu_custom_call.1} parent=1 // pred_check
      _
    $region71: #{tpu_custom_call.1} parent=1 // pred_check_branch
      %603 = sbr.rel (0) target = $region73
    $region72: #{tpu_custom_call.1} parent=1 // pred_region
      %604 = dma.done [#allocation4], 32
    $region73: #{tpu_custom_call.1} parent=1 // pred_fallthru
      _
    %605 = vsyncpa [#allocation3], 1
    %606 = vsyncpa [#allocation6], 1
    %607 = vsyncpa [#allocation9], 1
    %608 = vsyncpa [#allocation12], 1
    %609 = vsyncpa [#allocation4], 1

</llo_original>
